<compile_context>
chip_gen: v7x
topology: tpu7x:2x2x1
jax: 0.10.0
libtpu: 0.0.40
codegen_flags: <defaults>
</compile_context>

<pallas_src>
import functools

import jax
import jax.numpy as jnp
from jax.experimental import pallas as pl
from jax.experimental.pallas import tpu as pltpu

LANE = 128
_EPS = 1e-5


# ---------------------------------------------------------------------------
# Fused kernel: conv(im2col matmul) + folded BN + ReLU + GAP (sublane reduce)
# + merged C1|E1 head + merged block-diag C2|E2 head + masked softplus.
# One grid step handles `batch_tile` images x G sources.
# ---------------------------------------------------------------------------
def mddn_fused_kernel(p_ref, wconv_ref, sb_ref, w1_ref, b1_ref, w2_ref, b2_ref,
                      out_ref, h1_ref, *, hw):
    # p_ref     : (batch_tile*HW, K)      bf16   im2col patches (K = C_in*9)
    # wconv_ref : (K, G*F)                bf16   conv weights, G sources side by side
    # sb_ref    : (2, G*F)                f32    row 0 = BN scale, row 1 = BN bias
    # w1_ref    : (G*F, G*2H)             bf16   block-diag merged [C1|E1] weights
    # b1_ref    : (1, G*2H)               f32
    # w2_ref    : (G*2H, G*2C)            bf16   block-diag merged [C2|E2] weights
    # b2_ref    : (1, G*2C)               f32    columns: [out_0..out_{G-1} | evi_0..]
    # out_ref   : (batch_tile, G*2C)      f32
    # h1_ref    : (batch_tile, G*2H)      f32    merged [feat_g | e1_g] activations

    # Conv as one wide MXU matmul over all G sources.
    y = jnp.dot(p_ref[...], wconv_ref[...],
                preferred_element_type=jnp.float32)               # (M, G*F)
    y = jnp.maximum(y * sb_ref[0:1, :] + sb_ref[1:2, :], 0.0)     # folded BN + ReLU

    # Global average pool: reshape and reduce over HW (sublane/XLU reduce,
    # replaces the old O(N^2*HW) block-diagonal pooling matmul).
    m, gf = y.shape
    pooled = jnp.sum(y.reshape(m // hw, hw, gf), axis=1) * (1.0 / hw)  # (bt, G*F)
    pooled_c = pooled.astype(w1_ref.dtype)

    # Merged C1|E1 head: Linear + ReLU (contains features and E1 activations).
    h1 = jnp.dot(pooled_c, w1_ref[...],
                 preferred_element_type=jnp.float32) + b1_ref[...]
    h1 = jnp.maximum(h1, 0.0)                                     # (bt, G*2H)

    # Merged block-diagonal C2|E2 head.
    z = jnp.dot(h1.astype(w2_ref.dtype), w2_ref[...],
                preferred_element_type=jnp.float32) + b2_ref[...]  # (bt, G*2C)

    # Softplus only on the evidence half of the columns (stable form).
    half = z.shape[1] // 2
    col = jax.lax.broadcasted_iota(jnp.int32, z.shape, 1)
    softplus = jnp.maximum(z, 0.0) + jnp.log(1.0 + jnp.exp(-jnp.abs(z)))

    # Single full-width store per output (no zero-fill / masked sub-slices).
    out_ref[...] = jnp.where(col >= half, softplus, z)
    h1_ref[...] = h1


# ---------------------------------------------------------------------------
# Wrapper-side helpers
# ---------------------------------------------------------------------------
def im2col_3x3(x):
    # x: (N, C, H, W) NCHW, 3x3 conv, stride 1, padding 1 -> (N*HW, C*9)
    n, c, h, w = x.shape
    xp = jnp.pad(x, ((0, 0), (0, 0), (1, 1), (1, 1)))
    cols = [xp[:, :, dy:dy + h, dx:dx + w] for dy in range(3) for dx in range(3)]
    p = jnp.stack(cols, axis=2)                 # (N, C, 9, H, W)
    p = p.reshape(n, c * 9, h * w)
    p = jnp.transpose(p, (0, 2, 1))             # (N, HW, C*9) spatial-major
    return p.reshape(n * h * w, c * 9)


def _pick_group(source, feat_ch, lane=LANE):
    # Fill up to ~128 MXU output lanes, but keep >= 2 grid steps when possible.
    g = max(1, min(source, lane // max(feat_ch, 1)))
    while g > 1 and (source % g != 0 or source // g < 2):
        g -= 1
    if source % g != 0:
        g = 1
    return g


def _pick_batch_tile(n, hw, k_dim, gf, budget_bytes=6 << 20):
    # Keep the per-step patches tile + conv activation under a VMEM budget.
    per_image = hw * (2 * k_dim + 4 * gf + 2 * gf)
    max_imgs = max(1, budget_bytes // max(per_image, 1))
    if max_imgs >= n:
        return n
    bt = (max_imgs // 8) * 8                     # output block sublane constraint
    while bt >= 8 and n % bt:
        bt -= 8
    return bt if bt >= 8 else n


def _patches_spec(rows, k_dim, grid_invariant, tile_bytes):
    idx = lambda bt, grp: (bt, 0)
    if grid_invariant and tile_bytes > (4 << 20):
        # Grid-invariant large block: single-buffer to halve its VMEM footprint
        # (matters on v7x's 64 MiB VMEM).  Guarded for older JAX versions.
        try:
            return pl.BlockSpec((rows, k_dim), idx, pipeline_mode=pl.Buffered(1))
        except Exception:  # pragma: no cover - older JAX without pipeline_mode
            pass
    return pl.BlockSpec((rows, k_dim), idx)


@jax.jit
def mddn_forward_all(x, params):
    n, c, h, w = x.shape
    hw = h * w
    # im2col once for all sources; K = C_in*9 left unpadded (no zero-lane HBM).
    patches = im2col_3x3(x).astype(jnp.bfloat16)          # (N*HW, C*9)

    ng, k_dim, gf = params["wconv"].shape                 # num_groups, K, G*F
    g2h = params["w1"].shape[2]                           # G*2H
    g2c = params["w2"].shape[2]                           # G*2C

    batch_tile = _pick_batch_tile(n, hw, k_dim, gf)
    nbt = n // batch_tile
    rows = batch_tile * hw
    tile_bytes = rows * k_dim * patches.dtype.itemsize

    kernel = functools.partial(mddn_fused_kernel, hw=hw)
    in_specs = [
        _patches_spec(rows, k_dim, grid_invariant=(nbt == 1), tile_bytes=tile_bytes),
        pl.BlockSpec((None, k_dim, gf), lambda bt, grp: (grp, 0, 0)),
        pl.BlockSpec((None, 2, gf), lambda bt, grp: (grp, 0, 0)),
        pl.BlockSpec((None, gf, g2h), lambda bt, grp: (grp, 0, 0)),
        pl.BlockSpec((None, 1, g2h), lambda bt, grp: (grp, 0, 0)),
        pl.BlockSpec((None, g2h, g2c), lambda bt, grp: (grp, 0, 0)),
        pl.BlockSpec((None, 1, g2c), lambda bt, grp: (grp, 0, 0)),
    ]
    out_specs = [
        pl.BlockSpec((None, batch_tile, g2c), lambda bt, grp: (grp, bt, 0)),
        pl.BlockSpec((None, batch_tile, g2h), lambda bt, grp: (grp, bt, 0)),
    ]
    grid_spec = pltpu.PrefetchScalarGridSpec(
        num_scalar_prefetch=0,
        grid=(nbt, ng),                # batch tiles outer, source groups inner
        in_specs=in_specs,
        out_specs=out_specs,
    )
    out_slab, h1_slab = pl.pallas_call(
        kernel,
        out_shape=(jax.ShapeDtypeStruct((ng, n, g2c), jnp.float32),
                   jax.ShapeDtypeStruct((ng, n, g2h), jnp.float32)),
        grid_spec=grid_spec,
        compiler_params=pltpu.CompilerParams(
            dimension_semantics=("parallel", "parallel"),
            vmem_limit_bytes=32 * 1024 * 1024),
    )(patches, params["wconv"], params["sb"], params["w1"], params["b1"],
      params["w2"], params["b2"])
    return out_slab, h1_slab


# ---------------------------------------------------------------------------
# Pure-JAX f32 reference for one source (used for a tolerance check).
# ---------------------------------------------------------------------------
def _reference_source(x, p, eps=_EPS):
    y = jax.lax.conv_general_dilated(
        x, p["w_conv"], window_strides=(1, 1), padding="SAME",
        dimension_numbers=("NCHW", "OIHW", "NCHW"))
    y = y + p["b_conv"][None, :, None, None]
    y = (y - p["mean"][None, :, None, None]) / jnp.sqrt(p["var"] + eps)[None, :, None, None]
    y = y * p["gamma"][None, :, None, None] + p["beta"][None, :, None, None]
    y = jnp.maximum(y, 0.0)
    f = jnp.mean(y, axis=(2, 3))                                  # (N, F)
    feat = jnp.maximum(f @ p["wc1"] + p["bc1"], 0.0)
    out = feat @ p["wc2"] + p["bc2"]
    e1 = jnp.maximum(f @ p["we1"] + p["be1"], 0.0)
    z = e1 @ p["we2"] + p["be2"]
    evi = jnp.maximum(z, 0.0) + jnp.log(1.0 + jnp.exp(-jnp.abs(z)))
    return out, evi, feat


# ---------------------------------------------------------------------------
# MDDN replica (eval/'test'-mode BatchNorm semantics)
# ---------------------------------------------------------------------------
class MDDNPallas:
    def __init__(self, source, classes, in_ch, feat_ch, hidden, key, group=None):
        self.source, self.classes = source, classes
        self.feat_ch, self.hidden, self.in_ch = feat_ch, hidden, in_ch
        self.group = _pick_group(source, feat_ch) if group is None else group
        assert source % self.group == 0
        self.eps = _EPS

        raw = []
        for _ in range(source):
            key, *ks = jax.random.split(key, 13)
            raw.append(dict(
                w_conv=jax.random.normal(ks[0], (feat_ch, in_ch, 3, 3), jnp.float32) * 0.1,
                b_conv=jax.random.normal(ks[1], (feat_ch,), jnp.float32) * 0.05,
                gamma=1.0 + 0.1 * jax.random.normal(ks[2], (feat_ch,), jnp.float32),
                beta=0.1 * jax.random.normal(ks[3], (feat_ch,), jnp.float32),
                mean=0.1 * jax.random.normal(ks[4], (feat_ch,), jnp.float32),
                var=jax.random.uniform(ks[5], (feat_ch,), jnp.float32, 0.5, 1.5),
                wc1=jax.random.normal(ks[6], (feat_ch, hidden), jnp.float32) * 0.1,
                bc1=0.05 * jax.random.normal(ks[7], (hidden,), jnp.float32),
                wc2=jax.random.normal(ks[8], (hidden, classes), jnp.float32) * 0.1,
                bc2=jnp.zeros((classes,), jnp.float32),
                we1=jax.random.normal(ks[9], (feat_ch, hidden), jnp.float32) * 0.1,
                be1=0.05 * jax.random.normal(ks[10], (hidden,), jnp.float32),
                we2=jax.random.normal(ks[11], (hidden, classes), jnp.float32) * 0.1,
                be2=jnp.zeros((classes,), jnp.float32),
            ))
        self.raw = raw
        self.params = self._pack(raw)

    def _pack(self, raw):
        G, F, H, C = self.group, self.feat_ch, self.hidden, self.classes
        ng = self.source // G
        K = self.in_ch * 9
        wconv = jnp.zeros((ng, K, G * F), jnp.float32)
        sb = jnp.zeros((ng, 2, G * F), jnp.float32)
        w1 = jnp.zeros((ng, G * F, G * 2 * H), jnp.float32)
        b1 = jnp.zeros((ng, 1, G * 2 * H), jnp.float32)
        w2 = jnp.zeros((ng, G * 2 * H, G * 2 * C), jnp.float32)
        b2 = jnp.zeros((ng, 1, G * 2 * C), jnp.float32)
        for v, p in enumerate(raw):
            grp, g = divmod(v, G)
            # Fold conv bias + eval-mode BN into per-channel scale/bias.
            scale = p["gamma"] / jnp.sqrt(p["var"] + self.eps)
            bias = p["beta"] + (p["b_conv"] - p["mean"]) * scale
            wmat = p["w_conv"].reshape(F, K).T                       # (K, F)
            wconv = wconv.at[grp, :, g * F:(g + 1) * F].set(wmat)
            sb = sb.at[grp, 0, g * F:(g + 1) * F].set(scale)
            sb = sb.at[grp, 1, g * F:(g + 1) * F].set(bias)
            # Merged C1|E1 head (block-diagonal across sources).
            w1 = w1.at[grp, g * F:(g + 1) * F, g * 2 * H:g * 2 * H + H].set(p["wc1"])
            w1 = w1.at[grp, g * F:(g + 1) * F, g * 2 * H + H:(g + 1) * 2 * H].set(p["we1"])
            b1 = b1.at[grp, 0, g * 2 * H:g * 2 * H + H].set(p["bc1"])
            b1 = b1.at[grp, 0, g * 2 * H + H:(g + 1) * 2 * H].set(p["be1"])
            # Merged C2|E2 head; output columns laid out as [out_0.. | evi_0..].
            w2 = w2.at[grp, g * 2 * H:g * 2 * H + H, g * C:(g + 1) * C].set(p["wc2"])
            w2 = w2.at[grp, g * 2 * H + H:(g + 1) * 2 * H,
                       G * C + g * C:G * C + (g + 1) * C].set(p["we2"])
            b2 = b2.at[grp, 0, g * C:(g + 1) * C].set(p["bc2"])
            b2 = b2.at[grp, 0, G * C + g * C:G * C + (g + 1) * C].set(p["be2"])
        return dict(wconv=wconv.astype(jnp.bfloat16), sb=sb,
                    w1=w1.astype(jnp.bfloat16), b1=b1,
                    w2=w2.astype(jnp.bfloat16), b2=b2)

    def forward(self, x, mode="test", idx=-1):
        # TODO(synk): 'train'-mode batch-statistics BN / running-stat updates
        # (update_batch_stats) have no kernel-side equivalent; eval stats used.
        del mode
        out_slab, h1_slab = mddn_forward_all(x, self.params)
        G, H, C = self.group, self.hidden, self.classes
        evi, out, feats, alpha = {}, {}, {}, {}
        for v in range(self.source):
            if v == idx:
                continue
            grp, g = divmod(v, G)
            out[v] = out_slab[grp, :, g * C:(g + 1) * C]
            evi[v] = out_slab[grp, :, G * C + g * C:G * C + (g + 1) * C]
            feats[v] = h1_slab[grp, :, g * 2 * H:g * 2 * H + H]
            alpha[v] = evi[v] + 1.0
        self.out, self.evi, self.features, self.alpha = out, evi, feats, alpha
        return evi, out, feats


if __name__ == "__main__":
    key = jax.random.PRNGKey(0)
    k_in, k_par = jax.random.split(key)

    N, C_in, H, W = 2, 4, 16, 16
    FEAT, HID, CLASSES, SOURCE = 32, 32, 4, 4

    x = jax.random.normal(k_in, (N, C_in, H, W), jnp.float32)   # NCHW like PyTorch

    model = MDDNPallas(source=SOURCE, classes=CLASSES, in_ch=C_in,
                       feat_ch=FEAT, hidden=HID, key=k_par)
    evi, out, feats = model.forward(x, mode="test", idx=-1)

    for v in range(SOURCE):
        jax.block_until_ready(out[v])
        jax.block_until_ready(evi[v])
        jax.block_until_ready(feats[v])
        assert out[v].shape == (N, CLASSES)
        assert evi[v].shape == (N, CLASSES)
        assert feats[v].shape == (N, HID)
        assert bool(jnp.all(evi[v] >= 0.0))
        # Loose-tolerance check against a pure-JAX f32 reference (bf16 MXU ops).
        o_ref, e_ref, f_ref = _reference_source(x, model.raw[v])
        assert bool(jnp.allclose(out[v], o_ref, rtol=3e-2, atol=3e-2))
        assert bool(jnp.allclose(evi[v], e_ref, rtol=3e-2, atol=3e-2))
        assert bool(jnp.allclose(feats[v], f_ref, rtol=3e-2, atol=3e-2))

    print("KERNEL_OK")
</pallas_src>

<mosaic_0001>
module attributes {stable_mosaic.version = 11 : i64} {
  func.func @mddn_fused_kernel(%arg0: i32, %arg1: i32, %arg2: memref<512x36xbf16, #tpu.memory_space<vmem>>, %arg3: memref<1x36x64xbf16, #tpu.memory_space<vmem>>, %arg4: memref<1x2x64xf32, #tpu.memory_space<vmem>>, %arg5: memref<1x64x128xbf16, #tpu.memory_space<vmem>>, %arg6: memref<1x1x128xf32, #tpu.memory_space<vmem>>, %arg7: memref<1x128x16xbf16, #tpu.memory_space<vmem>>, %arg8: memref<1x1x16xf32, #tpu.memory_space<vmem>>, %arg9: memref<1x2x16xf32, #tpu.memory_space<vmem>>, %arg10: memref<1x2x128xf32, #tpu.memory_space<vmem>>) attributes {dimension_semantics = [#tpu.dimension_semantics<parallel>, #tpu.dimension_semantics<parallel>], iteration_bounds = array<i64: 1, 2>, scalar_prefetch = 0 : i64, scratch_operands = 0 : i64, tpu.core_type = #tpu.core_type<tc>, window_params = [{transform_indices = @transform_0, window_bounds = array<i64: 512, 36>}, {transform_indices = @transform_1, window_bounds = array<i64: 1, 36, 64>}, {transform_indices = @transform_2, window_bounds = array<i64: 1, 2, 64>}, {transform_indices = @transform_3, window_bounds = array<i64: 1, 64, 128>}, {transform_indices = @transform_4, window_bounds = array<i64: 1, 1, 128>}, {transform_indices = @transform_5, window_bounds = array<i64: 1, 128, 16>}, {transform_indices = @transform_6, window_bounds = array<i64: 1, 1, 16>}, {transform_indices = @transform_7, window_bounds = array<i64: 1, 2, 16>}, {transform_indices = @transform_8, window_bounds = array<i64: 1, 2, 128>}]} {
    %c0 = arith.constant 0 : index
    %c0_0 = arith.constant 0 : index
    %0 = vector.load %arg2[%c0, %c0_0] : memref<512x36xbf16, #tpu.memory_space<vmem>>, vector<512x36xbf16>
    %c0_1 = arith.constant 0 : index
    %c0_2 = arith.constant 0 : index
    %c0_3 = arith.constant 0 : index
    %1 = vector.load %arg3[%c0_1, %c0_2, %c0_3] : memref<1x36x64xbf16, #tpu.memory_space<vmem>>, vector<1x36x64xbf16>
    %2 = vector.shape_cast %1 : vector<1x36x64xbf16> to vector<36x64xbf16>
    %cst = arith.constant dense<0.000000e+00> : vector<512x64xf32>
    %3 = tpu.matmul %0, %2, %cst {dimension_numbers = #tpu.dot_dimension_numbers<[1], [0], [0], [1], [0, 0, 1, 1], [], []>} : vector<512x36xbf16>, vector<36x64xbf16>, vector<512x64xf32> -> vector<512x64xf32>
    %c0_4 = arith.constant 0 : index
    %c0_5 = arith.constant 0 : index
    %c0_6 = arith.constant 0 : index
    %4 = vector.load %arg4[%c0_4, %c0_5, %c0_6] : memref<1x2x64xf32, #tpu.memory_space<vmem>>, vector<1x1x64xf32>
    %5 = vector.shape_cast %4 : vector<1x1x64xf32> to vector<1x64xf32>
    %6 = vector.broadcast %5 : vector<1x64xf32> to vector<512x64xf32>
    %7 = arith.mulf %3, %6 : vector<512x64xf32>
    %c0_7 = arith.constant 0 : index
    %c1 = arith.constant 1 : index
    %c0_8 = arith.constant 0 : index
    %8 = vector.load %arg4[%c0_7, %c1, %c0_8] : memref<1x2x64xf32, #tpu.memory_space<vmem>>, vector<1x1x64xf32>
    %9 = vector.shape_cast %8 : vector<1x1x64xf32> to vector<1x64xf32>
    %10 = vector.broadcast %9 : vector<1x64xf32> to vector<512x64xf32>
    %11 = arith.addf %7, %10 : vector<512x64xf32>
    %cst_9 = arith.constant 0.000000e+00 : f32
    %12 = vector.broadcast %cst_9 : f32 to vector<512x64xf32>
    %13 = arith.maximumf %11, %12 : vector<512x64xf32>
    %14 = vector.shape_cast %13 : vector<512x64xf32> to vector<2x256x64xf32>
    %cst_10 = arith.constant dense<0.000000e+00> : vector<2x64xf32>
    %15 = vector.multi_reduction <add>, %14, %cst_10 [1] : vector<2x256x64xf32> to vector<2x64xf32>
    %cst_11 = arith.constant 3.906250e-03 : f32
    %16 = vector.broadcast %cst_11 : f32 to vector<2x64xf32>
    %17 = arith.mulf %15, %16 : vector<2x64xf32>
    %18 = arith.truncf %17 : vector<2x64xf32> to vector<2x64xbf16>
    %c0_12 = arith.constant 0 : index
    %c0_13 = arith.constant 0 : index
    %c0_14 = arith.constant 0 : index
    %19 = vector.load %arg5[%c0_12, %c0_13, %c0_14] : memref<1x64x128xbf16, #tpu.memory_space<vmem>>, vector<1x64x128xbf16>
    %20 = vector.shape_cast %19 : vector<1x64x128xbf16> to vector<64x128xbf16>
    %cst_15 = arith.constant dense<0.000000e+00> : vector<2x128xf32>
    %21 = tpu.matmul %18, %20, %cst_15 {dimension_numbers = #tpu.dot_dimension_numbers<[1], [0], [0], [1], [0, 0, 1, 1], [], []>} : vector<2x64xbf16>, vector<64x128xbf16>, vector<2x128xf32> -> vector<2x128xf32>
    %c0_16 = arith.constant 0 : index
    %c0_17 = arith.constant 0 : index
    %c0_18 = arith.constant 0 : index
    %22 = vector.load %arg6[%c0_16, %c0_17, %c0_18] : memref<1x1x128xf32, #tpu.memory_space<vmem>>, vector<1x1x128xf32>
    %23 = vector.shape_cast %22 : vector<1x1x128xf32> to vector<1x128xf32>
    %24 = vector.broadcast %23 : vector<1x128xf32> to vector<2x128xf32>
    %25 = arith.addf %21, %24 : vector<2x128xf32>
    %cst_19 = arith.constant 0.000000e+00 : f32
    %26 = vector.broadcast %cst_19 : f32 to vector<2x128xf32>
    %27 = arith.maximumf %25, %26 : vector<2x128xf32>
    %28 = arith.truncf %27 : vector<2x128xf32> to vector<2x128xbf16>
    %c0_20 = arith.constant 0 : index
    %c0_21 = arith.constant 0 : index
    %c0_22 = arith.constant 0 : index
    %29 = vector.load %arg7[%c0_20, %c0_21, %c0_22] : memref<1x128x16xbf16, #tpu.memory_space<vmem>>, vector<1x128x16xbf16>
    %30 = vector.shape_cast %29 : vector<1x128x16xbf16> to vector<128x16xbf16>
    %cst_23 = arith.constant dense<0.000000e+00> : vector<2x16xf32>
    %31 = tpu.matmul %28, %30, %cst_23 {dimension_numbers = #tpu.dot_dimension_numbers<[1], [0], [0], [1], [0, 0, 1, 1], [], []>} : vector<2x128xbf16>, vector<128x16xbf16>, vector<2x16xf32> -> vector<2x16xf32>
    %c0_24 = arith.constant 0 : index
    %c0_25 = arith.constant 0 : index
    %c0_26 = arith.constant 0 : index
    %32 = vector.load %arg8[%c0_24, %c0_25, %c0_26] : memref<1x1x16xf32, #tpu.memory_space<vmem>>, vector<1x1x16xf32>
    %33 = vector.shape_cast %32 : vector<1x1x16xf32> to vector<1x16xf32>
    %34 = vector.broadcast %33 : vector<1x16xf32> to vector<2x16xf32>
    %35 = arith.addf %31, %34 : vector<2x16xf32>
    %36 = tpu.iota {dimensions = array<i32: 1>} : vector<2x16xi32>
    %cst_27 = arith.constant 0.000000e+00 : f32
    %37 = vector.broadcast %cst_27 : f32 to vector<2x16xf32>
    %38 = arith.maximumf %35, %37 : vector<2x16xf32>
    %39 = math.absf %35 : vector<2x16xf32>
    %cst_28 = arith.constant 0.000000e+00 : f32
    %40 = vector.broadcast %cst_28 : f32 to vector<2x16xf32>
    %41 = arith.subf %40, %39 : vector<2x16xf32>
    %42 = math.exp %41 : vector<2x16xf32>
    %cst_29 = arith.constant 1.000000e+00 : f32
    %43 = vector.broadcast %cst_29 : f32 to vector<2x16xf32>
    %44 = arith.addf %43, %42 : vector<2x16xf32>
    %45 = math.log %44 : vector<2x16xf32>
    %46 = arith.addf %38, %45 : vector<2x16xf32>
    %c8_i32 = arith.constant 8 : i32
    %47 = vector.broadcast %c8_i32 : i32 to vector<2x16xi32>
    %48 = arith.cmpi sge, %36, %47 : vector<2x16xi32>
    %49 = arith.select %48, %46, %35 : vector<2x16xi1>, vector<2x16xf32>
    %c0_30 = arith.constant 0 : index
    %c0_31 = arith.constant 0 : index
    %c0_32 = arith.constant 0 : index
    %50 = vector.load %arg9[%c0_30, %c0_31, %c0_32] : memref<1x2x16xf32, #tpu.memory_space<vmem>>, vector<1x2x16xf32>
    %51 = vector.shape_cast %50 : vector<1x2x16xf32> to vector<2x16xf32>
    %52 = vector.shape_cast %49 : vector<2x16xf32> to vector<1x2x16xf32>
    tpu.vector_store %arg9[%c0_30, %c0_31, %c0_32], %52 {strides = array<i32>} : memref<1x2x16xf32, #tpu.memory_space<vmem>>, vector<1x2x16xf32>,
    %c0_33 = arith.constant 0 : index
    %c0_34 = arith.constant 0 : index
    %c0_35 = arith.constant 0 : index
    %53 = vector.load %arg10[%c0_33, %c0_34, %c0_35] : memref<1x2x128xf32, #tpu.memory_space<vmem>>, vector<1x2x128xf32>
    %54 = vector.shape_cast %53 : vector<1x2x128xf32> to vector<2x128xf32>
    %55 = vector.shape_cast %27 : vector<2x128xf32> to vector<1x2x128xf32>
    tpu.vector_store %arg10[%c0_33, %c0_34, %c0_35], %55 {strides = array<i32>} : memref<1x2x128xf32, #tpu.memory_space<vmem>>, vector<1x2x128xf32>,
    return
  }
  func.func @transform_0(%arg0: i32, %arg1: i32) -> (i32, i32) {
    %c0_i32 = arith.constant 0 : i32
    %c0_i32_0 = arith.constant 0 : i32
    return %arg0, %c0_i32 : i32, i32
  }
  func.func @transform_1(%arg0: i32, %arg1: i32) -> (i32, i32, i32) {
    %c0_i32 = arith.constant 0 : i32
    %c0_i32_0 = arith.constant 0 : i32
    %c0_i32_1 = arith.constant 0 : i32
    return %arg1, %c0_i32, %c0_i32_0 : i32, i32, i32
  }
  func.func @transform_2(%arg0: i32, %arg1: i32) -> (i32, i32, i32) {
    %c0_i32 = arith.constant 0 : i32
    %c0_i32_0 = arith.constant 0 : i32
    %c0_i32_1 = arith.constant 0 : i32
    return %arg1, %c0_i32, %c0_i32_0 : i32, i32, i32
  }
  func.func @transform_3(%arg0: i32, %arg1: i32) -> (i32, i32, i32) {
    %c0_i32 = arith.constant 0 : i32
    %c0_i32_0 = arith.constant 0 : i32
    %c0_i32_1 = arith.constant 0 : i32
    return %arg1, %c0_i32, %c0_i32_0 : i32, i32, i32
  }
  func.func @transform_4(%arg0: i32, %arg1: i32) -> (i32, i32, i32) {
    %c0_i32 = arith.constant 0 : i32
    %c0_i32_0 = arith.constant 0 : i32
    %c0_i32_1 = arith.constant 0 : i32
    return %arg1, %c0_i32, %c0_i32_0 : i32, i32, i32
  }
  func.func @transform_5(%arg0: i32, %arg1: i32) -> (i32, i32, i32) {
    %c0_i32 = arith.constant 0 : i32
    %c0_i32_0 = arith.constant 0 : i32
    %c0_i32_1 = arith.constant 0 : i32
    return %arg1, %c0_i32, %c0_i32_0 : i32, i32, i32
  }
  func.func @transform_6(%arg0: i32, %arg1: i32) -> (i32, i32, i32) {
    %c0_i32 = arith.constant 0 : i32
    %c0_i32_0 = arith.constant 0 : i32
    %c0_i32_1 = arith.constant 0 : i32
    return %arg1, %c0_i32, %c0_i32_0 : i32, i32, i32
  }
  func.func @transform_7(%arg0: i32, %arg1: i32) -> (i32, i32, i32) {
    %c0_i32 = arith.constant 0 : i32
    %c0_i32_0 = arith.constant 0 : i32
    return %arg1, %arg0, %c0_i32 : i32, i32, i32
  }
  func.func @transform_8(%arg0: i32, %arg1: i32) -> (i32, i32, i32) {
    %c0_i32 = arith.constant 0 : i32
    %c0_i32_0 = arith.constant 0 : i32
    return %arg1, %arg0, %c0_i32 : i32, i32, i32
  }
}

</mosaic_0001>

<llo_original>
// kernel: mddn_forward_all.1
$region0: #{mddn_forward_all.1}
  #allocation0 [shape = 'u32[]', space=smem, size = 0x4, offset = 0x4, fixed_abs, tag = 'smem constant byte address 0x4 - core index']
  #allocation1 [shape = 'u32[144,128]{1,0:T(1,128)}', space=vmem, size = 0x12000, scoped, tag = 'internal scratch']
  %s0 = inlined_call_operand.vmem [shape: bf16[512,36], index: 0, kind: input, shape index: {}]
  %s1 = inlined_call_operand.vmem [shape: bf16[2,36,64], index: 1, kind: input, shape index: {}]
  %s2 = inlined_call_operand.vmem [shape: f32[2,2,64], index: 2, kind: input, shape index: {}]
  %s3 = inlined_call_operand.vmem [shape: bf16[2,64,128], index: 3, kind: input, shape index: {}]
  %s4 = inlined_call_operand.vmem [shape: f32[2,1,128], index: 4, kind: input, shape index: {}]
  %s5 = inlined_call_operand.vmem [shape: bf16[2,128,16], index: 5, kind: input, shape index: {}]
  %s6 = inlined_call_operand.vmem [shape: f32[2,1,16], index: 6, kind: input, shape index: {}]
  %s7 = inlined_call_operand.hbm [shape: f32[2,2,16], index: 7, kind: output, shape index: {0}]
  %s8 = inlined_call_operand.hbm [shape: f32[2,2,128], index: 8, kind: output, shape index: {1}]
  %9 = xla_tuple %s7, %s8
  %s10 = sld [smem:[#allocation0]]
  $region69: #{mddn_forward_all.1} parent=0
    _
  %s12 = ssub.s32 1, %s10
  %s13 = scalar_select 0, %s12, %s10
  $region1: #{mddn_forward_all.1} parent=0
    #allocation2 [shape = 'u8[2048]{0}', space=vmem, size = 0x800, scoped, tag = 'output window, operand 0']
    #allocation3 [shape = 's32[2]{0}', space=sflag, size = 0x8, scoped, tag = 'scoped memory for mddn_forward_all.1']
    #allocation4 [shape = 'u8[2048]{0}', space=vmem, size = 0x800, scoped, tag = 'output window, operand 1']
    #allocation5 [shape = 's32[2]{0}', space=sflag, size = 0x8, scoped, tag = 'scoped memory for mddn_forward_all.1']
    %14 = vsyncpa [#allocation3], 0
    %s15 = scalar_lea.sflag [#allocation3], 1
    %16 = vsyncpa %s15, 0
    %17 = vsyncpa [#allocation5], 0
    %s18 = scalar_lea.sflag [#allocation5], 1
    %19 = vsyncpa %s18, 0
    loop: start=0, step=1, limit=4
    $region2: #{mddn_forward_all.1} parent=1 // loop_pre_header
      _
    $region3: #{mddn_forward_all.1} parent=1 // loop_header
      %s21 = sphi 0, %s25
      %p22 = scmp.ge.s32.totalorder %s21, 4
      %s28 = sphi 0, %s40
      %s29 = sphi 0, %s36
      %s30 = sphi 0, %s28
      %s31 = sphi 0, %s29
      %s32 = sphi 0, %s30
      %s33 = sphi 0, %s31
      %s43 = sphi 0, %s45
      %s46 = sphi 0, %s43
      %s47 = sphi 0, %s46
      %s63 = sphi 0, %s47
      %s69 = sphi 0, %s71
      %s72 = sphi 0, %s69
      %s73 = sphi 0, %s72
      %s89 = sphi 0, %s73
      %s95 = sphi 0, %s97
      %s98 = sphi 0, %s95
      %s99 = sphi 0, %s98
      %s115 = sphi 0, %s99
      %s121 = sphi 0, %s123
      %s124 = sphi 0, %s121
      %s125 = sphi 0, %s124
      %s141 = sphi 0, %s125
      %s147 = sphi 0, %s149
      %s150 = sphi 0, %s147
      %s151 = sphi 0, %s150
      %s167 = sphi 0, %s151
      %s173 = sphi 0, %s175
      %s176 = sphi 0, %s173
      %s177 = sphi 0, %s176
      %s193 = sphi 0, %s177
      %s199 = sphi 0, %s201
      %s202 = sphi 0, %s199
      %s203 = sphi 0, %s202
      %s219 = sphi 0, %s203
      %s227 = sphi 0, %s229
      %s230 = sphi 0, %s227
      %s231 = sphi 0, %s230
      %s247 = sphi 0, %s231
      %s255 = sphi 0, %s257
      %s258 = sphi 0, %s255
      %s259 = sphi 0, %s258
      %s275 = sphi 0, %s259
    $region4: #{mddn_forward_all.1} parent=1 // loop_header_branch
      %24 = sbr.rel (%p22) target = $region8
    $region5: #{mddn_forward_all.1} parent=1 // loop_body
      %s26 = ssub.s32 %s21, 1
      %s27 = ssub.s32 %s21, 2
      %s34 = sadd.s32 1, %s29
      %p35 = scmp.ge.s32.totalorder %s34, 2
      %s36 = scalar_select %p35, 0, %s34
      %s37 = sadd.s32 1, %s28
      %s38 = scalar_select %p35, %s37, %s28
      %p39 = scmp.ge.s32.totalorder %s38, 1
      %s40 = scalar_select %p39, 0, %s38
      %s41 = ssub.s32 %s28, %s40
      %p42 = scmp.eq.s32.totalorder %s41, 0
      %s44 = sadd.s32 %s43, 1
      %s45 = scalar_select %p42, %s43, %s44
      %p48 = pneg %p42
      %p49 = scmp.eq.s32.totalorder %s21, 1
      %p50 = por %p48, %p49
      %p51 = scmp.ne.s32.totalorder %s43, %s46
      %p52 = scmp.eq.s32.totalorder %s21, 0
      %p53 = por %p51, %p52
      %p54 = scmp.ne.s32.totalorder %s43, %s46
      %p55 = scmp.eq.s32.totalorder %s26, 1
      %p56 = por %p54, %p55
      %p57 = scmp.ne.s32.totalorder %s46, %s47
      %p58 = scmp.eq.s32.totalorder %s26, 0
      %p59 = por %p57, %p58
      %p60 = scmp.ne.s32.totalorder %s46, %s47
      %p61 = scmp.eq.s32.totalorder %s27, 1
      %p62 = por %p60, %p61
      %p64 = scmp.ne.s32.totalorder %s47, %s63
      %p65 = scmp.eq.s32.totalorder %s27, 0
      %p66 = por %p64, %p65
      %s67 = ssub.s32 %s29, %s36
      %p68 = scmp.eq.s32.totalorder %s67, 0
      %s70 = sadd.s32 %s69, 1
      %s71 = scalar_select %p68, %s69, %s70
      %p74 = pneg %p68
      %p75 = scmp.eq.s32.totalorder %s21, 1
      %p76 = por %p74, %p75
      %p77 = scmp.ne.s32.totalorder %s69, %s72
      %p78 = scmp.eq.s32.totalorder %s21, 0
      %p79 = por %p77, %p78
      %p80 = scmp.ne.s32.totalorder %s69, %s72
      %p81 = scmp.eq.s32.totalorder %s26, 1
      %p82 = por %p80, %p81
      %p83 = scmp.ne.s32.totalorder %s72, %s73
      %p84 = scmp.eq.s32.totalorder %s26, 0
      %p85 = por %p83, %p84
      %p86 = scmp.ne.s32.totalorder %s72, %s73
      %p87 = scmp.eq.s32.totalorder %s27, 1
      %p88 = por %p86, %p87
      %p90 = scmp.ne.s32.totalorder %s73, %s89
      %p91 = scmp.eq.s32.totalorder %s27, 0
      %p92 = por %p90, %p91
      %s93 = ssub.s32 %s29, %s36
      %p94 = scmp.eq.s32.totalorder %s93, 0
      %s96 = sadd.s32 %s95, 1
      %s97 = scalar_select %p94, %s95, %s96
      %p100 = pneg %p94
      %p101 = scmp.eq.s32.totalorder %s21, 1
      %p102 = por %p100, %p101
      %p103 = scmp.ne.s32.totalorder %s95, %s98
      %p104 = scmp.eq.s32.totalorder %s21, 0
      %p105 = por %p103, %p104
      %p106 = scmp.ne.s32.totalorder %s95, %s98
      %p107 = scmp.eq.s32.totalorder %s26, 1
      %p108 = por %p106, %p107
      %p109 = scmp.ne.s32.totalorder %s98, %s99
      %p110 = scmp.eq.s32.totalorder %s26, 0
      %p111 = por %p109, %p110
      %p112 = scmp.ne.s32.totalorder %s98, %s99
      %p113 = scmp.eq.s32.totalorder %s27, 1
      %p114 = por %p112, %p113
      %p116 = scmp.ne.s32.totalorder %s99, %s115
      %p117 = scmp.eq.s32.totalorder %s27, 0
      %p118 = por %p116, %p117
      %s119 = ssub.s32 %s29, %s36
      %p120 = scmp.eq.s32.totalorder %s119, 0
      %s122 = sadd.s32 %s121, 1
      %s123 = scalar_select %p120, %s121, %s122
      %p126 = pneg %p120
      %p127 = scmp.eq.s32.totalorder %s21, 1
      %p128 = por %p126, %p127
      %p129 = scmp.ne.s32.totalorder %s121, %s124
      %p130 = scmp.eq.s32.totalorder %s21, 0
      %p131 = por %p129, %p130
      %p132 = scmp.ne.s32.totalorder %s121, %s124
      %p133 = scmp.eq.s32.totalorder %s26, 1
      %p134 = por %p132, %p133
      %p135 = scmp.ne.s32.totalorder %s124, %s125
      %p136 = scmp.eq.s32.totalorder %s26, 0
      %p137 = por %p135, %p136
      %p138 = scmp.ne.s32.totalorder %s124, %s125
      %p139 = scmp.eq.s32.totalorder %s27, 1
      %p140 = por %p138, %p139
      %p142 = scmp.ne.s32.totalorder %s125, %s141
      %p143 = scmp.eq.s32.totalorder %s27, 0
      %p144 = por %p142, %p143
      %s145 = ssub.s32 %s29, %s36
      %p146 = scmp.eq.s32.totalorder %s145, 0
      %s148 = sadd.s32 %s147, 1
      %s149 = scalar_select %p146, %s147, %s148
      %p152 = pneg %p146
      %p153 = scmp.eq.s32.totalorder %s21, 1
      %p154 = por %p152, %p153
      %p155 = scmp.ne.s32.totalorder %s147, %s150
      %p156 = scmp.eq.s32.totalorder %s21, 0
      %p157 = por %p155, %p156
      %p158 = scmp.ne.s32.totalorder %s147, %s150
      %p159 = scmp.eq.s32.totalorder %s26, 1
      %p160 = por %p158, %p159
      %p161 = scmp.ne.s32.totalorder %s150, %s151
      %p162 = scmp.eq.s32.totalorder %s26, 0
      %p163 = por %p161, %p162
      %p164 = scmp.ne.s32.totalorder %s150, %s151
      %p165 = scmp.eq.s32.totalorder %s27, 1
      %p166 = por %p164, %p165
      %p168 = scmp.ne.s32.totalorder %s151, %s167
      %p169 = scmp.eq.s32.totalorder %s27, 0
      %p170 = por %p168, %p169
      %s171 = ssub.s32 %s29, %s36
      %p172 = scmp.eq.s32.totalorder %s171, 0
      %s174 = sadd.s32 %s173, 1
      %s175 = scalar_select %p172, %s173, %s174
      %p178 = pneg %p172
      %p179 = scmp.eq.s32.totalorder %s21, 1
      %p180 = por %p178, %p179
      %p181 = scmp.ne.s32.totalorder %s173, %s176
      %p182 = scmp.eq.s32.totalorder %s21, 0
      %p183 = por %p181, %p182
      %p184 = scmp.ne.s32.totalorder %s173, %s176
      %p185 = scmp.eq.s32.totalorder %s26, 1
      %p186 = por %p184, %p185
      %p187 = scmp.ne.s32.totalorder %s176, %s177
      %p188 = scmp.eq.s32.totalorder %s26, 0
      %p189 = por %p187, %p188
      %p190 = scmp.ne.s32.totalorder %s176, %s177
      %p191 = scmp.eq.s32.totalorder %s27, 1
      %p192 = por %p190, %p191
      %p194 = scmp.ne.s32.totalorder %s177, %s193
      %p195 = scmp.eq.s32.totalorder %s27, 0
      %p196 = por %p194, %p195
      %s197 = ssub.s32 %s29, %s36
      %p198 = scmp.eq.s32.totalorder %s197, 0
      %s200 = sadd.s32 %s199, 1
      %s201 = scalar_select %p198, %s199, %s200
      %p204 = pneg %p198
      %p205 = scmp.eq.s32.totalorder %s21, 1
      %p206 = por %p204, %p205
      %p207 = scmp.ne.s32.totalorder %s199, %s202
      %p208 = scmp.eq.s32.totalorder %s21, 0
      %p209 = por %p207, %p208
      %p210 = scmp.ne.s32.totalorder %s199, %s202
      %p211 = scmp.eq.s32.totalorder %s26, 1
      %p212 = por %p210, %p211
      %p213 = scmp.ne.s32.totalorder %s202, %s203
      %p214 = scmp.eq.s32.totalorder %s26, 0
      %p215 = por %p213, %p214
      %p216 = scmp.ne.s32.totalorder %s202, %s203
      %p217 = scmp.eq.s32.totalorder %s27, 1
      %p218 = por %p216, %p217
      %p220 = scmp.ne.s32.totalorder %s203, %s219
      %p221 = scmp.eq.s32.totalorder %s27, 0
      %p222 = por %p220, %p221
      %s223 = ssub.s32 %s29, %s36
      %s224 = ssub.s32 %s28, %s40
      %s225 = sor.u32 %s223, %s224
      %p226 = scmp.eq.s32.totalorder %s225, 0
      %s228 = sadd.s32 %s227, 1
      %s229 = scalar_select %p226, %s227, %s228
      %p232 = pneg %p226
      %p233 = scmp.eq.s32.totalorder %s21, 1
      %p234 = por %p232, %p233
      %p235 = scmp.ne.s32.totalorder %s227, %s230
      %p236 = scmp.eq.s32.totalorder %s21, 0
      %p237 = por %p235, %p236
      %p238 = scmp.ne.s32.totalorder %s227, %s230
      %p239 = scmp.eq.s32.totalorder %s26, 1
      %p240 = por %p238, %p239
      %p241 = scmp.ne.s32.totalorder %s230, %s231
      %p242 = scmp.eq.s32.totalorder %s26, 0
      %p243 = por %p241, %p242
      %p244 = scmp.ne.s32.totalorder %s230, %s231
      %p245 = scmp.eq.s32.totalorder %s27, 1
      %p246 = por %p244, %p245
      %p248 = scmp.ne.s32.totalorder %s231, %s247
      %p249 = scmp.eq.s32.totalorder %s27, 0
      %p250 = por %p248, %p249
      %s251 = ssub.s32 %s29, %s36
      %s252 = ssub.s32 %s28, %s40
      %s253 = sor.u32 %s251, %s252
      %p254 = scmp.eq.s32.totalorder %s253, 0
      %s256 = sadd.s32 %s255, 1
      %s257 = scalar_select %p254, %s255, %s256
      %p260 = pneg %p254
      %p261 = scmp.eq.s32.totalorder %s21, 1
      %p262 = por %p260, %p261
      %p263 = scmp.ne.s32.totalorder %s255, %s258
      %p264 = scmp.eq.s32.totalorder %s21, 0
      %p265 = por %p263, %p264
      %p266 = scmp.ne.s32.totalorder %s255, %s258
      %p267 = scmp.eq.s32.totalorder %s26, 1
      %p268 = por %p266, %p267
      %p269 = scmp.ne.s32.totalorder %s258, %s259
      %p270 = scmp.eq.s32.totalorder %s26, 0
      %p271 = por %p269, %p270
      %p272 = scmp.ne.s32.totalorder %s258, %s259
      %p273 = scmp.eq.s32.totalorder %s27, 1
      %p274 = por %p272, %p273
      %p276 = scmp.ne.s32.totalorder %s259, %s275
      %p277 = scmp.eq.s32.totalorder %s27, 0
      %p278 = por %p276, %p277
      %p279 = scmp.le.s32.totalorder 1, %s21
      %p280 = scmp.lt.s32.totalorder %s21, 3
      %p281 = pnand %p279, %p280
      %p282 = pneg %p281
      // Predicated region
      $region9: #{mddn_forward_all.1} parent=5 // pred_check
        _
      $region10: #{mddn_forward_all.1} parent=5 // pred_check_branch
        %284 = sbr.rel (%p281) target = $region12
      $region11: #{mddn_forward_all.1} parent=5 // pred_region
        %s285 = ssub.s32 %s21, 1
        // Predicated region
        $region13: #{mddn_forward_all.1} parent=11 // pred_check
          %p286 = pneg %p59
        $region14: #{mddn_forward_all.1} parent=11 // pred_check_branch
          %288 = sbr.rel (%p286) target = $region16
        $region15: #{mddn_forward_all.1} parent=11 // pred_region
          %s289 = smul.u32 64, %s30
          %p290 = scmp.lt.s32.totalorder %s289, 63
          %s291 = scalar_select %p290, %s289, 63
          %s292 = smul.addr %s291, 4
          %s293 = scalar_lea.vmem %s0, %s292
          %s294 = smul.u32 64, %s30
        $region16: #{mddn_forward_all.1} parent=11 // pred_fallthru
          _
      $region12: #{mddn_forward_all.1} parent=5 // pred_fallthru
        _
      %p295 = scmp.lt.s32.totalorder %s21, 2
      // Predicated region
      $region17: #{mddn_forward_all.1} parent=5 // pred_check
        %p296 = pneg %p295
      $region18: #{mddn_forward_all.1} parent=5 // pred_check_branch
        %298 = sbr.rel (%p296) target = $region20
      $region19: #{mddn_forward_all.1} parent=5 // pred_region
        // Predicated region
        $region21: #{mddn_forward_all.1} parent=19 // pred_check
          %p299 = pneg %p79
        $region22: #{mddn_forward_all.1} parent=19 // pred_check_branch
          %301 = sbr.rel (%p299) target = $region24
        $region23: #{mddn_forward_all.1} parent=19 // pred_region
          %p302 = scmp.lt.s32.totalorder %s29, 1
          %s303 = scalar_select %p302, %s29, 1
          %s304 = smul.addr %s303, 5
          %s305 = smul.addr %s304, 4
          %s306 = scalar_lea.vmem %s1, %s305
        $region24: #{mddn_forward_all.1} parent=19 // pred_fallthru
          _
        // Predicated region
        $region25: #{mddn_forward_all.1} parent=19 // pred_check
          %p307 = pneg %p105
        $region26: #{mddn_forward_all.1} parent=19 // pred_check_branch
          %309 = sbr.rel (%p307) target = $region28
        $region27: #{mddn_forward_all.1} parent=19 // pred_region
          %p310 = scmp.lt.s32.totalorder %s29, 1
          %s311 = scalar_select %p310, %s29, 1
          %s312 = smul.addr %s311, 2
          %s313 = scalar_lea.vmem %s2, %s312
        $region28: #{mddn_forward_all.1} parent=19 // pred_fallthru
          _
        // Predicated region
        $region29: #{mddn_forward_all.1} parent=19 // pred_check
          %p314 = pneg %p131
        $region30: #{mddn_forward_all.1} parent=19 // pred_check_branch
          %316 = sbr.rel (%p314) target = $region32
        $region31: #{mddn_forward_all.1} parent=19 // pred_region
          %p317 = scmp.lt.s32.totalorder %s29, 1
          %s318 = scalar_select %p317, %s29, 1
          %s319 = smul.addr %s318, 8
          %s320 = smul.addr %s319, 4
          %s321 = scalar_lea.vmem %s3, %s320
        $region32: #{mddn_forward_all.1} parent=19 // pred_fallthru
          _
        // Predicated region
        $region33: #{mddn_forward_all.1} parent=19 // pred_check
          %p322 = pneg %p157
        $region34: #{mddn_forward_all.1} parent=19 // pred_check_branch
          %324 = sbr.rel (%p322) target = $region36
        $region35: #{mddn_forward_all.1} parent=19 // pred_region
          %p325 = scmp.lt.s32.totalorder %s29, 1
          %s326 = scalar_select %p325, %s29, 1
          %s327 = scalar_lea.vmem %s4, %s326
        $region36: #{mddn_forward_all.1} parent=19 // pred_fallthru
          _
        // Predicated region
        $region37: #{mddn_forward_all.1} parent=19 // pred_check
          %p328 = pneg %p183
        $region38: #{mddn_forward_all.1} parent=19 // pred_check_branch
          %330 = sbr.rel (%p328) target = $region40
        $region39: #{mddn_forward_all.1} parent=19 // pred_region
          %p331 = scmp.lt.s32.totalorder %s29, 1
          %s332 = scalar_select %p331, %s29, 1
          %s333 = smul.addr %s332, 16
          %s334 = smul.addr %s333, 4
          %s335 = scalar_lea.vmem %s5, %s334
        $region40: #{mddn_forward_all.1} parent=19 // pred_fallthru
          _
        // Predicated region
        $region41: #{mddn_forward_all.1} parent=19 // pred_check
          %p336 = pneg %p209
        $region42: #{mddn_forward_all.1} parent=19 // pred_check_branch
          %338 = sbr.rel (%p336) target = $region44
        $region43: #{mddn_forward_all.1} parent=19 // pred_region
          %p339 = scmp.lt.s32.totalorder %s29, 1
          %s340 = scalar_select %p339, %s29, 1
          %s341 = scalar_lea.vmem %s6, %s340
        $region44: #{mddn_forward_all.1} parent=19 // pred_fallthru
          _
      $region20: #{mddn_forward_all.1} parent=5 // pred_fallthru
        _
      %p342 = scmp.le.s32.totalorder 1, %s21
      %p343 = scmp.lt.s32.totalorder %s21, 3
      %p344 = pnand %p342, %p343
      %p345 = pneg %p344
      // Predicated region
      $region45: #{mddn_forward_all.1} parent=5 // pred_check
        _
      $region46: #{mddn_forward_all.1} parent=5 // pred_check_branch
        %347 = sbr.rel (%p344) target = $region48
      $region47: #{mddn_forward_all.1} parent=5 // pred_region
        %s348 = ssub.s32 %s21, 1
        %s349 = smul.u32 64, %s30
        %p350 = scmp.lt.s32.totalorder %s349, 63
        %s351 = scalar_select %p350, %s349, 63
        %s352 = smul.addr %s351, 4
        %s353 = scalar_lea.vmem %s0, %s352
        %p354 = pneg %p59
        %p355 = pneg %p56
        %p356 = scmp.lt.s32.totalorder %s31, 1
        %s357 = scalar_select %p356, %s31, 1
        %s358 = smul.addr %s357, 5
        %s359 = smul.addr %s358, 4
        %s360 = scalar_lea.vmem %s1, %s359
        %p361 = pneg %p85
        %p362 = pneg %p82
        %p363 = scmp.lt.s32.totalorder %s31, 1
        %s364 = scalar_select %p363, %s31, 1
        %s365 = smul.addr %s364, 2
        %s366 = scalar_lea.vmem %s2, %s365
        %p367 = pneg %p111
        %p368 = pneg %p108
        %p369 = scmp.lt.s32.totalorder %s31, 1
        %s370 = scalar_select %p369, %s31, 1
        %s371 = smul.addr %s370, 8
        %s372 = smul.addr %s371, 4
        %s373 = scalar_lea.vmem %s3, %s372
        %p374 = pneg %p137
        %p375 = pneg %p134
        %p376 = scmp.lt.s32.totalorder %s31, 1
        %s377 = scalar_select %p376, %s31, 1
        %s378 = scalar_lea.vmem %s4, %s377
        %p379 = pneg %p163
        %p380 = pneg %p160
        %p381 = scmp.lt.s32.totalorder %s31, 1
        %s382 = scalar_select %p381, %s31, 1
        %s383 = smul.addr %s382, 16
        %s384 = smul.addr %s383, 4
        %s385 = scalar_lea.vmem %s5, %s384
        %p386 = pneg %p189
        %p387 = pneg %p186
        %p388 = scmp.lt.s32.totalorder %s31, 1
        %s389 = scalar_select %p388, %s31, 1
        %s390 = scalar_lea.vmem %s6, %s389
        %p391 = pneg %p215
        %p392 = pneg %p212
        %p393 = pneg %p243
        %p394 = pneg %p240
        %s395 = sand.u32 %s230, 1
        %s396 = scalar_lea.sflag [#allocation3], %s395
        %s397 = sand.u32 %s230, 1
        %s398 = smul.addr %s397, 2
        %s399 = scalar_lea.vmem [#allocation2], %s398
        %p400 = pneg %p271
        %p401 = pneg %p268
        %s402 = sand.u32 %s258, 1
        %s403 = scalar_lea.sflag [#allocation5], %s402
        %s404 = sand.u32 %s258, 1
        %s405 = smul.addr %s404, 2
        %s406 = scalar_lea.vmem [#allocation4], %s405
        %s407 = smul.u32 64, %s30
        %p408 = scmp.lt.s32.totalorder %s407, 63
        %s409 = scalar_select %p408, %s407, 63
        %s410 = smul.addr %s409, 4
        %s411 = scalar_lea.vmem %s0, %s410
        %s412 = smul.u32 64, %s30
        %p413 = scmp.lt.s32.totalorder %s31, 1
        %s414 = scalar_select %p413, %s31, 1
        %s415 = smul.addr %s414, 5
        %s416 = smul.addr %s415, 4
        %s417 = scalar_lea.vmem %s1, %s416
        %p418 = scmp.lt.s32.totalorder %s31, 1
        %s419 = scalar_select %p418, %s31, 1
        %s420 = smul.addr %s419, 2
        %s421 = scalar_lea.vmem %s2, %s420
        %p422 = scmp.lt.s32.totalorder %s31, 1
        %s423 = scalar_select %p422, %s31, 1
        %s424 = smul.addr %s423, 8
        %s425 = smul.addr %s424, 4
        %s426 = scalar_lea.vmem %s3, %s425
        %p427 = scmp.lt.s32.totalorder %s31, 1
        %s428 = scalar_select %p427, %s31, 1
        %s429 = scalar_lea.vmem %s4, %s428
        %p430 = scmp.lt.s32.totalorder %s31, 1
        %s431 = scalar_select %p430, %s31, 1
        %s432 = smul.addr %s431, 16
        %s433 = smul.addr %s432, 4
        %s434 = scalar_lea.vmem %s5, %s433
        %p435 = scmp.lt.s32.totalorder %s31, 1
        %s436 = scalar_select %p435, %s31, 1
        %s437 = scalar_lea.vmem %s6, %s436
        %v439 = vld [vmem:[%s411] sm:$0xf]
        %v440 = vld [vmem:[%s411 + $0x4] sm:$0xf]
        %v441 = vld [vmem:[%s411 + $0x8] sm:$0xf]
        %v442 = vld [vmem:[%s411 + $0xc] sm:$0xf]
        %v443 = vld [vmem:[%s411 + $0x10] sm:$0xf]
        %v444 = vld [vmem:[%s411 + $0x14] sm:$0xf]
        %v445 = vld [vmem:[%s411 + $0x18] sm:$0xf]
        %v446 = vld [vmem:[%s411 + $0x1c] sm:$0xf]
        %v447 = vld [vmem:[%s411 + $0x20] sm:$0xf]
        %v448 = vld [vmem:[%s411 + $0x24] sm:$0xf]
        %v449 = vld [vmem:[%s411 + $0x28] sm:$0xf]
        %v450 = vld [vmem:[%s411 + $0x2c] sm:$0xf]
        %v451 = vld [vmem:[%s411 + $0x30] sm:$0xf]
        %v452 = vld [vmem:[%s411 + $0x34] sm:$0xf]
        %v453 = vld [vmem:[%s411 + $0x38] sm:$0xf]
        %v454 = vld [vmem:[%s411 + $0x3c] sm:$0xf]
        %v455 = vld [vmem:[%s411 + $0x40] sm:$0xf]
        %v456 = vld [vmem:[%s411 + $0x44] sm:$0xf]
        %v457 = vld [vmem:[%s411 + $0x48] sm:$0xf]
        %v458 = vld [vmem:[%s411 + $0x4c] sm:$0xf]
        %v459 = vld [vmem:[%s411 + $0x50] sm:$0xf]
        %v460 = vld [vmem:[%s411 + $0x54] sm:$0xf]
        %v461 = vld [vmem:[%s411 + $0x58] sm:$0xf]
        %v462 = vld [vmem:[%s411 + $0x5c] sm:$0xf]
        %v463 = vld [vmem:[%s411 + $0x60] sm:$0xf]
        %v464 = vld [vmem:[%s411 + $0x64] sm:$0xf]
        %v465 = vld [vmem:[%s411 + $0x68] sm:$0xf]
        %v466 = vld [vmem:[%s411 + $0x6c] sm:$0xf]
        %v467 = vld [vmem:[%s411 + $0x70] sm:$0xf]
        %v468 = vld [vmem:[%s411 + $0x74] sm:$0xf]
        %v469 = vld [vmem:[%s411 + $0x78] sm:$0xf]
        %v470 = vld [vmem:[%s411 + $0x7c] sm:$0xf]
        %v471 = vld [vmem:[%s411 + $0x80] sm:$0xf]
        %v472 = vld [vmem:[%s411 + $0x84] sm:$0xf]
        %v473 = vld [vmem:[%s411 + $0x88] sm:$0xf]
        %v474 = vld [vmem:[%s411 + $0x8c] sm:$0xf]
        %v475 = vld [vmem:[%s411 + $0x90] sm:$0xf]
        %v476 = vld [vmem:[%s411 + $0x94] sm:$0xf]
        %v477 = vld [vmem:[%s411 + $0x98] sm:$0xf]
        %v478 = vld [vmem:[%s411 + $0x9c] sm:$0xf]
        %v479 = vld [vmem:[%s411 + $0xa0] sm:$0xf]
        %v480 = vld [vmem:[%s411 + $0xa4] sm:$0xf]
        %v481 = vld [vmem:[%s411 + $0xa8] sm:$0xf]
        %v482 = vld [vmem:[%s411 + $0xac] sm:$0xf]
        %v483 = vld [vmem:[%s411 + $0xb0] sm:$0xf]
        %v484 = vld [vmem:[%s411 + $0xb4] sm:$0xf]
        %v485 = vld [vmem:[%s411 + $0xb8] sm:$0xf]
        %v486 = vld [vmem:[%s411 + $0xbc] sm:$0xf]
        %v487 = vld [vmem:[%s411 + $0xc0] sm:$0xf]
        %v488 = vld [vmem:[%s411 + $0xc4] sm:$0xf]
        %v489 = vld [vmem:[%s411 + $0xc8] sm:$0xf]
        %v490 = vld [vmem:[%s411 + $0xcc] sm:$0xf]
        %v491 = vld [vmem:[%s411 + $0xd0] sm:$0xf]
        %v492 = vld [vmem:[%s411 + $0xd4] sm:$0xf]
        %v493 = vld [vmem:[%s411 + $0xd8] sm:$0xf]
        %v494 = vld [vmem:[%s411 + $0xdc] sm:$0xf]
        %v495 = vld [vmem:[%s411 + $0xe0] sm:$0xf]
        %v496 = vld [vmem:[%s411 + $0xe4] sm:$0xf]
        %v497 = vld [vmem:[%s411 + $0xe8] sm:$0xf]
        %v498 = vld [vmem:[%s411 + $0xec] sm:$0xf]
        %v499 = vld [vmem:[%s411 + $0xf0] sm:$0xf]
        %v500 = vld [vmem:[%s411 + $0xf4] sm:$0xf]
        %v501 = vld [vmem:[%s411 + $0xf8] sm:$0xf]
        %v502 = vld [vmem:[%s411 + $0xfc] sm:$0xf]
        %v503 = vld [vmem:[%s417] sm:$0xf]
        %v504 = vld [vmem:[%s417 + $0x4] sm:$0xf]
        %v505 = vld [vmem:[%s417 + $0x8] sm:$0xf]
        %v506 = vld [vmem:[%s417 + $0xc] sm:$0xf]
        %v507 = vld [vmem:[%s417 + $0x10] sm:$0x3]
        %v572 = vunpack.c.l.b16 %v439
        %v573 = vunpack.c.l.b16 %v440
        %v574 = vunpack.c.l.b16 %v441
        %v575 = vunpack.c.l.b16 %v442
        %v576 = vunpack.c.l.b16 %v443
        %v577 = vunpack.c.l.b16 %v444
        %v578 = vunpack.c.l.b16 %v445
        %v579 = vunpack.c.l.b16 %v446
        %v580 = vunpack.c.l.b16 %v447
        %v581 = vunpack.c.l.b16 %v448
        %v582 = vunpack.c.l.b16 %v449
        %v583 = vunpack.c.l.b16 %v450
        %v584 = vunpack.c.l.b16 %v451
        %v585 = vunpack.c.l.b16 %v452
        %v586 = vunpack.c.l.b16 %v453
        %v587 = vunpack.c.l.b16 %v454
        %v588 = vunpack.c.l.b16 %v455
        %v589 = vunpack.c.l.b16 %v456
        %v590 = vunpack.c.l.b16 %v457
        %v591 = vunpack.c.l.b16 %v458
        %v592 = vunpack.c.l.b16 %v459
        %v593 = vunpack.c.l.b16 %v460
        %v594 = vunpack.c.l.b16 %v461
        %v595 = vunpack.c.l.b16 %v462
        %v596 = vunpack.c.l.b16 %v463
        %v597 = vunpack.c.l.b16 %v464
        %v598 = vunpack.c.l.b16 %v465
        %v599 = vunpack.c.l.b16 %v466
        %v600 = vunpack.c.l.b16 %v467
        %v601 = vunpack.c.l.b16 %v468
        %v602 = vunpack.c.l.b16 %v469
        %v603 = vunpack.c.l.b16 %v470
        %v604 = vunpack.c.l.b16 %v471
        %v605 = vunpack.c.l.b16 %v472
        %v606 = vunpack.c.l.b16 %v473
        %v607 = vunpack.c.l.b16 %v474
        %v608 = vunpack.c.l.b16 %v475
        %v609 = vunpack.c.l.b16 %v476
        %v610 = vunpack.c.l.b16 %v477
        %v611 = vunpack.c.l.b16 %v478
        %v612 = vunpack.c.l.b16 %v479
        %v613 = vunpack.c.l.b16 %v480
        %v614 = vunpack.c.l.b16 %v481
        %v615 = vunpack.c.l.b16 %v482
        %v616 = vunpack.c.l.b16 %v483
        %v617 = vunpack.c.l.b16 %v484
        %v618 = vunpack.c.l.b16 %v485
        %v619 = vunpack.c.l.b16 %v486
        %v620 = vunpack.c.l.b16 %v487
        %v621 = vunpack.c.l.b16 %v488
        %v622 = vunpack.c.l.b16 %v489
        %v623 = vunpack.c.l.b16 %v490
        %v624 = vunpack.c.l.b16 %v491
        %v625 = vunpack.c.l.b16 %v492
        %v626 = vunpack.c.l.b16 %v493
        %v627 = vunpack.c.l.b16 %v494
        %v628 = vunpack.c.l.b16 %v495
        %v629 = vunpack.c.l.b16 %v496
        %v630 = vunpack.c.l.b16 %v497
        %v631 = vunpack.c.l.b16 %v498
        %v632 = vunpack.c.l.b16 %v499
        %v633 = vunpack.c.l.b16 %v500
        %v634 = vunpack.c.l.b16 %v501
        %v635 = vunpack.c.l.b16 %v502
        %v636 = vpack.c.b16 %v573, %v572
        %v637 = vpack.c.b16 %v575, %v574
        %v638 = vpack.c.b16 %v577, %v576
        %v639 = vpack.c.b16 %v579, %v578
        %v640 = vpack.c.b16 %v581, %v580
        %v641 = vpack.c.b16 %v583, %v582
        %v642 = vpack.c.b16 %v585, %v584
        %v643 = vpack.c.b16 %v587, %v586
        %v644 = vpack.c.b16 %v589, %v588
        %v645 = vpack.c.b16 %v591, %v590
        %v646 = vpack.c.b16 %v593, %v592
        %v647 = vpack.c.b16 %v595, %v594
        %v648 = vpack.c.b16 %v597, %v596
        %v649 = vpack.c.b16 %v599, %v598
        %v650 = vpack.c.b16 %v601, %v600
        %v651 = vpack.c.b16 %v603, %v602
        %v652 = vpack.c.b16 %v605, %v604
        %v653 = vpack.c.b16 %v607, %v606
        %v654 = vpack.c.b16 %v609, %v608
        %v655 = vpack.c.b16 %v611, %v610
        %v656 = vpack.c.b16 %v613, %v612
        %v657 = vpack.c.b16 %v615, %v614
        %v658 = vpack.c.b16 %v617, %v616
        %v659 = vpack.c.b16 %v619, %v618
        %v660 = vpack.c.b16 %v621, %v620
        %v661 = vpack.c.b16 %v623, %v622
        %v662 = vpack.c.b16 %v625, %v624
        %v663 = vpack.c.b16 %v627, %v626
        %v664 = vpack.c.b16 %v629, %v628
        %v665 = vpack.c.b16 %v631, %v630
        %v666 = vpack.c.b16 %v633, %v632
        %v667 = vpack.c.b16 %v635, %v634
        %v673 = vunpack.c.l.b16 %v503
        %v674 = vunpack.c.l.b16 %v504
        %v675 = vunpack.c.l.b16 %v505
        %v676 = vunpack.c.l.b16 %v506
        %v677 = vunpack.c.l.b16 %v507
        %v678 = vpack.c.b16 %v674, %v673
        %v679 = vpack.c.b16 %v676, %v675
        %v680 = vpack.c.b16 %v677, %v677
        %vm683 = vcmask 293888
        %v685 = vsel %vm683, %v636, 0
        %v688 = vsel %vm683, %v637, 0
        %v691 = vsel %vm683, %v638, 0
        %v694 = vsel %vm683, %v639, 0
        %v697 = vsel %vm683, %v640, 0
        %v700 = vsel %vm683, %v641, 0
        %v703 = vsel %vm683, %v642, 0
        %v706 = vsel %vm683, %v643, 0
        %v709 = vsel %vm683, %v644, 0
        %v712 = vsel %vm683, %v645, 0
        %v715 = vsel %vm683, %v646, 0
        %v718 = vsel %vm683, %v647, 0
        %v721 = vsel %vm683, %v648, 0
        %v724 = vsel %vm683, %v649, 0
        %v727 = vsel %vm683, %v650, 0
        %v730 = vsel %vm683, %v651, 0
        %v733 = vsel %vm683, %v652, 0
        %v736 = vsel %vm683, %v653, 0
        %v739 = vsel %vm683, %v654, 0
        %v742 = vsel %vm683, %v655, 0
        %v745 = vsel %vm683, %v656, 0
        %v748 = vsel %vm683, %v657, 0
        %v751 = vsel %vm683, %v658, 0
        %v754 = vsel %vm683, %v659, 0
        %v757 = vsel %vm683, %v660, 0
        %v760 = vsel %vm683, %v661, 0
        %v763 = vsel %vm683, %v662, 0
        %v766 = vsel %vm683, %v663, 0
        %v769 = vsel %vm683, %v664, 0
        %v772 = vsel %vm683, %v665, 0
        %v775 = vsel %vm683, %v666, 0
        %v778 = vsel %vm683, %v667, 0
        %vm780 = vcmask 1041408
        %v782 = vsel %vm780, %v680, 0
        %784 = vmatprep.subr.bf16.mxu0 0
        %785 = vmatpush1.bf16.msra.mxu0 %v678
        %786 = vmatprep.subr.bf16.mxu0 0
        %787 = vmatpush1.bf16.msra.mxu0 %v679
        %788 = vmatprep.subr.bf16.mxu0 0
        %789 = vmatpush1.bf16.msra.mxu0 %v782
        %790 = vmatprep.subr.bf16.mxu0 0
        %791 = vmatpush1.bf16.msra.mxu0 0
        %792 = vmatprep.subr.bf16.mxu0 0
        %793 = vmatpush1.bf16.msra.mxu0 0
        %794 = vmatprep.subr.bf16.mxu0 0
        %795 = vmatpush1.bf16.msra.mxu0 0
        %796 = vmatprep.subr.bf16.mxu0 0
        %797 = vmatpush1.bf16.msra.mxu0 0
        %798 = vmatprep.subr.bf16.mxu0 0
        %799 = vmatpush1.bf16.msra.mxu0 0
        %800 = vmatprep.subr.bf16.mxu0 0
        %801 = vmatpush1.bf16.msra.mxu0 0
        %802 = vmatprep.subr.bf16.mxu0 0
        %803 = vmatpush1.bf16.msra.mxu0 0
        %804 = vmatprep.subr.bf16.mxu0 0
        %805 = vmatpush1.bf16.msra.mxu0 0
        %806 = vmatprep.subr.bf16.mxu0 0
        %807 = vmatpush1.bf16.msra.mxu0 0
        %808 = vmatprep.subr.bf16.mxu0 0
        %809 = vmatpush1.bf16.msra.mxu0 0
        %810 = vmatprep.subr.bf16.mxu0 0
        %811 = vmatpush1.bf16.msra.mxu0 0
        %812 = vmatprep.subr.bf16.mxu0 0
        %813 = vmatpush1.bf16.msra.mxu0 0
        %814 = vmatprep.subr.bf16.mxu0 0
        %815 = vmatpush1.bf16.msra.mxu0 0
        %816 = vmatprep.mubr.bf16.mxu0 0
        %817 = vmatmul.mubr.bf16.gmra.mrb[0].mxu0 %v685
        %v818 = vpop.f32.mrb[0].mxu0
        %v819 = vadd.f32 0.0, %v818
        %v820 = vpop.f32.mrb[0].mxu0
        %v821 = vpop.f32.mrb[0].mxu0
        %v822 = vadd.f32 0.0, %v821
        %v823 = vpop.f32.mrb[0].mxu0
        %824 = vmatprep.mubr.bf16.mxu0 0
        %825 = vmatmul.mubr.bf16.gmra.mrb[0].mxu0 %v688
        %v826 = vpop.f32.mrb[0].mxu0
        %v827 = vadd.f32 0.0, %v826
        %v828 = vpop.f32.mrb[0].mxu0
        %v829 = vpop.f32.mrb[0].mxu0
        %v830 = vadd.f32 0.0, %v829
        %v831 = vpop.f32.mrb[0].mxu0
        %832 = vmatprep.mubr.bf16.mxu0 0
        %833 = vmatmul.mubr.bf16.gmra.mrb[0].mxu0 %v691
        %v834 = vpop.f32.mrb[0].mxu0
        %v835 = vadd.f32 0.0, %v834
        %v836 = vpop.f32.mrb[0].mxu0
        %v837 = vpop.f32.mrb[0].mxu0
        %v838 = vadd.f32 0.0, %v837
        %v839 = vpop.f32.mrb[0].mxu0
        %840 = vmatprep.mubr.bf16.mxu0 0
        %841 = vmatmul.mubr.bf16.gmra.mrb[0].mxu0 %v694
        %v842 = vpop.f32.mrb[0].mxu0
        %v843 = vadd.f32 0.0, %v842
        %v844 = vpop.f32.mrb[0].mxu0
        %v845 = vpop.f32.mrb[0].mxu0
        %v846 = vadd.f32 0.0, %v845
        %v847 = vpop.f32.mrb[0].mxu0
        %848 = vmatprep.mubr.bf16.mxu0 0
        %849 = vmatmul.mubr.bf16.gmra.mrb[0].mxu0 %v697
        %v850 = vpop.f32.mrb[0].mxu0
        %v851 = vadd.f32 0.0, %v850
        %v852 = vpop.f32.mrb[0].mxu0
        %v853 = vpop.f32.mrb[0].mxu0
        %v854 = vadd.f32 0.0, %v853
        %v855 = vpop.f32.mrb[0].mxu0
        %856 = vmatprep.mubr.bf16.mxu0 0
        %857 = vmatmul.mubr.bf16.gmra.mrb[0].mxu0 %v700
        %v858 = vpop.f32.mrb[0].mxu0
        %v859 = vadd.f32 0.0, %v858
        %v860 = vpop.f32.mrb[0].mxu0
        %v861 = vpop.f32.mrb[0].mxu0
        %v862 = vadd.f32 0.0, %v861
        %v863 = vpop.f32.mrb[0].mxu0
        %864 = vmatprep.mubr.bf16.mxu0 0
        %865 = vmatmul.mubr.bf16.gmra.mrb[0].mxu0 %v703
        %v866 = vpop.f32.mrb[0].mxu0
        %v867 = vadd.f32 0.0, %v866
        %v868 = vpop.f32.mrb[0].mxu0
        %v869 = vpop.f32.mrb[0].mxu0
        %v870 = vadd.f32 0.0, %v869
        %v871 = vpop.f32.mrb[0].mxu0
        %872 = vmatprep.mubr.bf16.mxu0 0
        %873 = vmatmul.mubr.bf16.gmra.mrb[0].mxu0 %v706
        %v874 = vpop.f32.mrb[0].mxu0
        %v875 = vadd.f32 0.0, %v874
        %v876 = vpop.f32.mrb[0].mxu0
        %v877 = vpop.f32.mrb[0].mxu0
        %v878 = vadd.f32 0.0, %v877
        %v879 = vpop.f32.mrb[0].mxu0
        %880 = vmatprep.mubr.bf16.mxu0 0
        %881 = vmatmul.mubr.bf16.gmra.mrb[0].mxu0 %v709
        %v882 = vpop.f32.mrb[0].mxu0
        %v883 = vadd.f32 0.0, %v882
        %v884 = vpop.f32.mrb[0].mxu0
        %v885 = vpop.f32.mrb[0].mxu0
        %v886 = vadd.f32 0.0, %v885
        %v887 = vpop.f32.mrb[0].mxu0
        %888 = vmatprep.mubr.bf16.mxu0 0
        %889 = vmatmul.mubr.bf16.gmra.mrb[0].mxu0 %v712
        %v890 = vpop.f32.mrb[0].mxu0
        %v891 = vadd.f32 0.0, %v890
        %v892 = vpop.f32.mrb[0].mxu0
        %v893 = vpop.f32.mrb[0].mxu0
        %v894 = vadd.f32 0.0, %v893
        %v895 = vpop.f32.mrb[0].mxu0
        %896 = vmatprep.mubr.bf16.mxu0 0
        %897 = vmatmul.mubr.bf16.gmra.mrb[0].mxu0 %v715
        %v898 = vpop.f32.mrb[0].mxu0
        %v899 = vadd.f32 0.0, %v898
        %v900 = vpop.f32.mrb[0].mxu0
        %v901 = vpop.f32.mrb[0].mxu0
        %v902 = vadd.f32 0.0, %v901
        %v903 = vpop.f32.mrb[0].mxu0
        %904 = vmatprep.mubr.bf16.mxu0 0
        %905 = vmatmul.mubr.bf16.gmra.mrb[0].mxu0 %v718
        %v906 = vpop.f32.mrb[0].mxu0
        %v907 = vadd.f32 0.0, %v906
        %v908 = vpop.f32.mrb[0].mxu0
        %v909 = vpop.f32.mrb[0].mxu0
        %v910 = vadd.f32 0.0, %v909
        %v911 = vpop.f32.mrb[0].mxu0
        %912 = vmatprep.mubr.bf16.mxu0 0
        %913 = vmatmul.mubr.bf16.gmra.mrb[0].mxu0 %v721
        %v914 = vpop.f32.mrb[0].mxu0
        %v915 = vadd.f32 0.0, %v914
        %v916 = vpop.f32.mrb[0].mxu0
        %v917 = vpop.f32.mrb[0].mxu0
        %v918 = vadd.f32 0.0, %v917
        %v919 = vpop.f32.mrb[0].mxu0
        %920 = vmatprep.mubr.bf16.mxu0 0
        %921 = vmatmul.mubr.bf16.gmra.mrb[0].mxu0 %v724
        %v922 = vpop.f32.mrb[0].mxu0
        %v923 = vadd.f32 0.0, %v922
        %v924 = vpop.f32.mrb[0].mxu0
        %v925 = vpop.f32.mrb[0].mxu0
        %v926 = vadd.f32 0.0, %v925
        %v927 = vpop.f32.mrb[0].mxu0
        %928 = vmatprep.mubr.bf16.mxu0 0
        %929 = vmatmul.mubr.bf16.gmra.mrb[0].mxu0 %v727
        %v930 = vpop.f32.mrb[0].mxu0
        %v931 = vadd.f32 0.0, %v930
        %v932 = vpop.f32.mrb[0].mxu0
        %v933 = vpop.f32.mrb[0].mxu0
        %v934 = vadd.f32 0.0, %v933
        %v935 = vpop.f32.mrb[0].mxu0
        %936 = vmatprep.mubr.bf16.mxu0 0
        %937 = vmatmul.mubr.bf16.gmra.mrb[0].mxu0 %v730
        %v938 = vpop.f32.mrb[0].mxu0
        %v939 = vadd.f32 0.0, %v938
        %v940 = vpop.f32.mrb[0].mxu0
        %v941 = vpop.f32.mrb[0].mxu0
        %v942 = vadd.f32 0.0, %v941
        %v943 = vpop.f32.mrb[0].mxu0
        %944 = vmatprep.mubr.bf16.mxu0 0
        %945 = vmatmul.mubr.bf16.gmra.mrb[0].mxu0 %v733
        %v946 = vpop.f32.mrb[0].mxu0
        %v947 = vadd.f32 0.0, %v946
        %v948 = vpop.f32.mrb[0].mxu0
        %v949 = vpop.f32.mrb[0].mxu0
        %v950 = vadd.f32 0.0, %v949
        %v951 = vpop.f32.mrb[0].mxu0
        %952 = vmatprep.mubr.bf16.mxu0 0
        %953 = vmatmul.mubr.bf16.gmra.mrb[0].mxu0 %v736
        %v954 = vpop.f32.mrb[0].mxu0
        %v955 = vadd.f32 0.0, %v954
        %v956 = vpop.f32.mrb[0].mxu0
        %v957 = vpop.f32.mrb[0].mxu0
        %v958 = vadd.f32 0.0, %v957
        %v959 = vpop.f32.mrb[0].mxu0
        %960 = vmatprep.mubr.bf16.mxu0 0
        %961 = vmatmul.mubr.bf16.gmra.mrb[0].mxu0 %v739
        %v962 = vpop.f32.mrb[0].mxu0
        %v963 = vadd.f32 0.0, %v962
        %v964 = vpop.f32.mrb[0].mxu0
        %v965 = vpop.f32.mrb[0].mxu0
        %v966 = vadd.f32 0.0, %v965
        %v967 = vpop.f32.mrb[0].mxu0
        %968 = vmatprep.mubr.bf16.mxu0 0
        %969 = vmatmul.mubr.bf16.gmra.mrb[0].mxu0 %v742
        %v970 = vpop.f32.mrb[0].mxu0
        %v971 = vadd.f32 0.0, %v970
        %v972 = vpop.f32.mrb[0].mxu0
        %v973 = vpop.f32.mrb[0].mxu0
        %v974 = vadd.f32 0.0, %v973
        %v975 = vpop.f32.mrb[0].mxu0
        %976 = vmatprep.mubr.bf16.mxu0 0
        %977 = vmatmul.mubr.bf16.gmra.mrb[0].mxu0 %v745
        %v978 = vpop.f32.mrb[0].mxu0
        %v979 = vadd.f32 0.0, %v978
        %v980 = vpop.f32.mrb[0].mxu0
        %v981 = vpop.f32.mrb[0].mxu0
        %v982 = vadd.f32 0.0, %v981
        %v983 = vpop.f32.mrb[0].mxu0
        %984 = vmatprep.mubr.bf16.mxu0 0
        %985 = vmatmul.mubr.bf16.gmra.mrb[0].mxu0 %v748
        %v986 = vpop.f32.mrb[0].mxu0
        %v987 = vadd.f32 0.0, %v986
        %v988 = vpop.f32.mrb[0].mxu0
        %v989 = vpop.f32.mrb[0].mxu0
        %v990 = vadd.f32 0.0, %v989
        %v991 = vpop.f32.mrb[0].mxu0
        %992 = vmatprep.mubr.bf16.mxu0 0
        %993 = vmatmul.mubr.bf16.gmra.mrb[0].mxu0 %v751
        %v994 = vpop.f32.mrb[0].mxu0
        %v995 = vadd.f32 0.0, %v994
        %v996 = vpop.f32.mrb[0].mxu0
        %v997 = vpop.f32.mrb[0].mxu0
        %v998 = vadd.f32 0.0, %v997
        %v999 = vpop.f32.mrb[0].mxu0
        %1000 = vmatprep.mubr.bf16.mxu0 0
        %1001 = vmatmul.mubr.bf16.gmra.mrb[0].mxu0 %v754
        %v1002 = vpop.f32.mrb[0].mxu0
        %v1003 = vadd.f32 0.0, %v1002
        %v1004 = vpop.f32.mrb[0].mxu0
        %v1005 = vpop.f32.mrb[0].mxu0
        %v1006 = vadd.f32 0.0, %v1005
        %v1007 = vpop.f32.mrb[0].mxu0
        %1008 = vmatprep.mubr.bf16.mxu0 0
        %1009 = vmatmul.mubr.bf16.gmra.mrb[0].mxu0 %v757
        %v1010 = vpop.f32.mrb[0].mxu0
        %v1011 = vadd.f32 0.0, %v1010
        %v1012 = vpop.f32.mrb[0].mxu0
        %v1013 = vpop.f32.mrb[0].mxu0
        %v1014 = vadd.f32 0.0, %v1013
        %v1015 = vpop.f32.mrb[0].mxu0
        %1016 = vmatprep.mubr.bf16.mxu0 0
        %1017 = vmatmul.mubr.bf16.gmra.mrb[0].mxu0 %v760
        %v1018 = vpop.f32.mrb[0].mxu0
        %v1019 = vadd.f32 0.0, %v1018
        %v1020 = vpop.f32.mrb[0].mxu0
        %v1021 = vpop.f32.mrb[0].mxu0
        %v1022 = vadd.f32 0.0, %v1021
        %v1023 = vpop.f32.mrb[0].mxu0
        %1024 = vmatprep.mubr.bf16.mxu0 0
        %1025 = vmatmul.mubr.bf16.gmra.mrb[0].mxu0 %v763
        %v1026 = vpop.f32.mrb[0].mxu0
        %v1027 = vadd.f32 0.0, %v1026
        %v1028 = vpop.f32.mrb[0].mxu0
        %v1029 = vpop.f32.mrb[0].mxu0
        %v1030 = vadd.f32 0.0, %v1029
        %v1031 = vpop.f32.mrb[0].mxu0
        %1032 = vmatprep.mubr.bf16.mxu0 0
        %1033 = vmatmul.mubr.bf16.gmra.mrb[0].mxu0 %v766
        %v1034 = vpop.f32.mrb[0].mxu0
        %v1035 = vadd.f32 0.0, %v1034
        %v1036 = vpop.f32.mrb[0].mxu0
        %v1037 = vpop.f32.mrb[0].mxu0
        %v1038 = vadd.f32 0.0, %v1037
        %v1039 = vpop.f32.mrb[0].mxu0
        %1040 = vmatprep.mubr.bf16.mxu0 0
        %1041 = vmatmul.mubr.bf16.gmra.mrb[0].mxu0 %v769
        %v1042 = vpop.f32.mrb[0].mxu0
        %v1043 = vadd.f32 0.0, %v1042
        %v1044 = vpop.f32.mrb[0].mxu0
        %v1045 = vpop.f32.mrb[0].mxu0
        %v1046 = vadd.f32 0.0, %v1045
        %v1047 = vpop.f32.mrb[0].mxu0
        %1048 = vmatprep.mubr.bf16.mxu0 0
        %1049 = vmatmul.mubr.bf16.gmra.mrb[0].mxu0 %v772
        %v1050 = vpop.f32.mrb[0].mxu0
        %v1051 = vadd.f32 0.0, %v1050
        %v1052 = vpop.f32.mrb[0].mxu0
        %v1053 = vpop.f32.mrb[0].mxu0
        %v1054 = vadd.f32 0.0, %v1053
        %v1055 = vpop.f32.mrb[0].mxu0
        %1056 = vmatprep.mubr.bf16.mxu0 0
        %1057 = vmatmul.mubr.bf16.gmra.mrb[0].mxu0 %v775
        %v1058 = vpop.f32.mrb[0].mxu0
        %v1059 = vadd.f32 0.0, %v1058
        %v1060 = vpop.f32.mrb[0].mxu0
        %v1061 = vpop.f32.mrb[0].mxu0
        %v1062 = vadd.f32 0.0, %v1061
        %v1063 = vpop.f32.mrb[0].mxu0
        %1064 = vmatprep.mubr.bf16.mxu0 0
        %1065 = vmatmul.mubr.bf16.gmra.mrb[0].mxu0 %v778
        %v1066 = vpop.f32.mrb[0].mxu0
        %v1067 = vadd.f32 0.0, %v1066
        %v1068 = vpop.f32.mrb[0].mxu0
        %v1069 = vpop.f32.mrb[0].mxu0
        %v1070 = vadd.f32 0.0, %v1069
        %v1071 = vpop.f32.mrb[0].mxu0
        %1072 = vdwg.mxu0
        %v1073 = vld [vmem:[%s421] sm:$0x1]
        %v1074 = vlaneseq
        %v1075 = vshrl.u32 %v1074, 7
        %v1076 = vsub.s32 0, %v1075
        %v1077 = vrot.slane %v1073, %v1076
        %v1078 = vmul.f32 %v819, %v1077
        %v1079 = vmul.f32 %v822, %v1077
        %v1080 = vmul.f32 %v827, %v1077
        %v1081 = vmul.f32 %v830, %v1077
        %v1082 = vmul.f32 %v835, %v1077
        %v1083 = vmul.f32 %v838, %v1077
        %v1084 = vmul.f32 %v843, %v1077
        %v1085 = vmul.f32 %v846, %v1077
        %v1086 = vmul.f32 %v851, %v1077
        %v1087 = vmul.f32 %v854, %v1077
        %v1088 = vmul.f32 %v859, %v1077
        %v1089 = vmul.f32 %v862, %v1077
        %v1090 = vmul.f32 %v867, %v1077
        %v1091 = vmul.f32 %v870, %v1077
        %v1092 = vmul.f32 %v875, %v1077
        %v1093 = vmul.f32 %v878, %v1077
        %v1094 = vmul.f32 %v883, %v1077
        %v1095 = vmul.f32 %v886, %v1077
        %v1096 = vmul.f32 %v891, %v1077
        %v1097 = vmul.f32 %v894, %v1077
        %v1098 = vmul.f32 %v899, %v1077
        %v1099 = vmul.f32 %v902, %v1077
        %v1100 = vmul.f32 %v907, %v1077
        %v1101 = vmul.f32 %v910, %v1077
        %v1102 = vmul.f32 %v915, %v1077
        %v1103 = vmul.f32 %v918, %v1077
        %v1104 = vmul.f32 %v923, %v1077
        %v1105 = vmul.f32 %v926, %v1077
        %v1106 = vmul.f32 %v931, %v1077
        %v1107 = vmul.f32 %v934, %v1077
        %v1108 = vmul.f32 %v939, %v1077
        %v1109 = vmul.f32 %v942, %v1077
        %v1110 = vmul.f32 %v947, %v1077
        %v1111 = vmul.f32 %v950, %v1077
        %v1112 = vmul.f32 %v955, %v1077
        %v1113 = vmul.f32 %v958, %v1077
        %v1114 = vmul.f32 %v963, %v1077
        %v1115 = vmul.f32 %v966, %v1077
        %v1116 = vmul.f32 %v971, %v1077
        %v1117 = vmul.f32 %v974, %v1077
        %v1118 = vmul.f32 %v979, %v1077
        %v1119 = vmul.f32 %v982, %v1077
        %v1120 = vmul.f32 %v987, %v1077
        %v1121 = vmul.f32 %v990, %v1077
        %v1122 = vmul.f32 %v995, %v1077
        %v1123 = vmul.f32 %v998, %v1077
        %v1124 = vmul.f32 %v1003, %v1077
        %v1125 = vmul.f32 %v1006, %v1077
        %v1126 = vmul.f32 %v1011, %v1077
        %v1127 = vmul.f32 %v1014, %v1077
        %v1128 = vmul.f32 %v1019, %v1077
        %v1129 = vmul.f32 %v1022, %v1077
        %v1130 = vmul.f32 %v1027, %v1077
        %v1131 = vmul.f32 %v1030, %v1077
        %v1132 = vmul.f32 %v1035, %v1077
        %v1133 = vmul.f32 %v1038, %v1077
        %v1134 = vmul.f32 %v1043, %v1077
        %v1135 = vmul.f32 %v1046, %v1077
        %v1136 = vmul.f32 %v1051, %v1077
        %v1137 = vmul.f32 %v1054, %v1077
        %v1138 = vmul.f32 %v1059, %v1077
        %v1139 = vmul.f32 %v1062, %v1077
        %v1140 = vmul.f32 %v1067, %v1077
        %v1141 = vmul.f32 %v1070, %v1077
        %v1142 = vld [vmem:[%s421 + $0x1] sm:$0x1]
        %v1143 = vlaneseq
        %v1144 = vshrl.u32 %v1143, 7
        %v1145 = vsub.s32 0, %v1144
        %v1146 = vrot.slane %v1142, %v1145
        %v1147 = vadd.f32 %v1078, %v1146
        %v1148 = vadd.f32 %v1079, %v1146
        %v1149 = vadd.f32 %v1080, %v1146
        %v1150 = vadd.f32 %v1081, %v1146
        %v1151 = vadd.f32 %v1082, %v1146
        %v1152 = vadd.f32 %v1083, %v1146
        %v1153 = vadd.f32 %v1084, %v1146
        %v1154 = vadd.f32 %v1085, %v1146
        %v1155 = vadd.f32 %v1086, %v1146
        %v1156 = vadd.f32 %v1087, %v1146
        %v1157 = vadd.f32 %v1088, %v1146
        %v1158 = vadd.f32 %v1089, %v1146
        %v1159 = vadd.f32 %v1090, %v1146
        %v1160 = vadd.f32 %v1091, %v1146
        %v1161 = vadd.f32 %v1092, %v1146
        %v1162 = vadd.f32 %v1093, %v1146
        %v1163 = vadd.f32 %v1094, %v1146
        %v1164 = vadd.f32 %v1095, %v1146
        %v1165 = vadd.f32 %v1096, %v1146
        %v1166 = vadd.f32 %v1097, %v1146
        %v1167 = vadd.f32 %v1098, %v1146
        %v1168 = vadd.f32 %v1099, %v1146
        %v1169 = vadd.f32 %v1100, %v1146
        %v1170 = vadd.f32 %v1101, %v1146
        %v1171 = vadd.f32 %v1102, %v1146
        %v1172 = vadd.f32 %v1103, %v1146
        %v1173 = vadd.f32 %v1104, %v1146
        %v1174 = vadd.f32 %v1105, %v1146
        %v1175 = vadd.f32 %v1106, %v1146
        %v1176 = vadd.f32 %v1107, %v1146
        %v1177 = vadd.f32 %v1108, %v1146
        %v1178 = vadd.f32 %v1109, %v1146
        %v1179 = vadd.f32 %v1110, %v1146
        %v1180 = vadd.f32 %v1111, %v1146
        %v1181 = vadd.f32 %v1112, %v1146
        %v1182 = vadd.f32 %v1113, %v1146
        %v1183 = vadd.f32 %v1114, %v1146
        %v1184 = vadd.f32 %v1115, %v1146
        %v1185 = vadd.f32 %v1116, %v1146
        %v1186 = vadd.f32 %v1117, %v1146
        %v1187 = vadd.f32 %v1118, %v1146
        %v1188 = vadd.f32 %v1119, %v1146
        %v1189 = vadd.f32 %v1120, %v1146
        %v1190 = vadd.f32 %v1121, %v1146
        %v1191 = vadd.f32 %v1122, %v1146
        %v1192 = vadd.f32 %v1123, %v1146
        %v1193 = vadd.f32 %v1124, %v1146
        %v1194 = vadd.f32 %v1125, %v1146
        %v1195 = vadd.f32 %v1126, %v1146
        %v1196 = vadd.f32 %v1127, %v1146
        %v1197 = vadd.f32 %v1128, %v1146
        %v1198 = vadd.f32 %v1129, %v1146
        %v1199 = vadd.f32 %v1130, %v1146
        %v1200 = vadd.f32 %v1131, %v1146
        %v1201 = vadd.f32 %v1132, %v1146
        %v1202 = vadd.f32 %v1133, %v1146
        %v1203 = vadd.f32 %v1134, %v1146
        %v1204 = vadd.f32 %v1135, %v1146
        %v1205 = vadd.f32 %v1136, %v1146
        %v1206 = vadd.f32 %v1137, %v1146
        %v1207 = vadd.f32 %v1138, %v1146
        %v1208 = vadd.f32 %v1139, %v1146
        %v1209 = vadd.f32 %v1140, %v1146
        %v1210 = vadd.f32 %v1141, %v1146
        %v1211 = vmax.f32 %v1147, 0.0
        %v1212 = vmax.f32 %v1148, 0.0
        %v1213 = vmax.f32 %v1149, 0.0
        %v1214 = vmax.f32 %v1150, 0.0
        %v1215 = vmax.f32 %v1151, 0.0
        %v1216 = vmax.f32 %v1152, 0.0
        %v1217 = vmax.f32 %v1153, 0.0
        %v1218 = vmax.f32 %v1154, 0.0
        %v1219 = vmax.f32 %v1155, 0.0
        %v1220 = vmax.f32 %v1156, 0.0
        %v1221 = vmax.f32 %v1157, 0.0
        %v1222 = vmax.f32 %v1158, 0.0
        %v1223 = vmax.f32 %v1159, 0.0
        %v1224 = vmax.f32 %v1160, 0.0
        %v1225 = vmax.f32 %v1161, 0.0
        %v1226 = vmax.f32 %v1162, 0.0
        %v1227 = vmax.f32 %v1163, 0.0
        %v1228 = vmax.f32 %v1164, 0.0
        %v1229 = vmax.f32 %v1165, 0.0
        %v1230 = vmax.f32 %v1166, 0.0
        %v1231 = vmax.f32 %v1167, 0.0
        %v1232 = vmax.f32 %v1168, 0.0
        %v1233 = vmax.f32 %v1169, 0.0
        %v1234 = vmax.f32 %v1170, 0.0
        %v1235 = vmax.f32 %v1171, 0.0
        %v1236 = vmax.f32 %v1172, 0.0
        %v1237 = vmax.f32 %v1173, 0.0
        %v1238 = vmax.f32 %v1174, 0.0
        %v1239 = vmax.f32 %v1175, 0.0
        %v1240 = vmax.f32 %v1176, 0.0
        %v1241 = vmax.f32 %v1177, 0.0
        %v1242 = vmax.f32 %v1178, 0.0
        %v1243 = vmax.f32 %v1179, 0.0
        %v1244 = vmax.f32 %v1180, 0.0
        %v1245 = vmax.f32 %v1181, 0.0
        %v1246 = vmax.f32 %v1182, 0.0
        %v1247 = vmax.f32 %v1183, 0.0
        %v1248 = vmax.f32 %v1184, 0.0
        %v1249 = vmax.f32 %v1185, 0.0
        %v1250 = vmax.f32 %v1186, 0.0
        %v1251 = vmax.f32 %v1187, 0.0
        %v1252 = vmax.f32 %v1188, 0.0
        %v1253 = vmax.f32 %v1189, 0.0
        %v1254 = vmax.f32 %v1190, 0.0
        %v1255 = vmax.f32 %v1191, 0.0
        %v1256 = vmax.f32 %v1192, 0.0
        %v1257 = vmax.f32 %v1193, 0.0
        %v1258 = vmax.f32 %v1194, 0.0
        %v1259 = vmax.f32 %v1195, 0.0
        %v1260 = vmax.f32 %v1196, 0.0
        %v1261 = vmax.f32 %v1197, 0.0
        %v1262 = vmax.f32 %v1198, 0.0
        %v1263 = vmax.f32 %v1199, 0.0
        %v1264 = vmax.f32 %v1200, 0.0
        %v1265 = vmax.f32 %v1201, 0.0
        %v1266 = vmax.f32 %v1202, 0.0
        %v1267 = vmax.f32 %v1203, 0.0
        %v1268 = vmax.f32 %v1204, 0.0
        %v1269 = vmax.f32 %v1205, 0.0
        %v1270 = vmax.f32 %v1206, 0.0
        %v1271 = vmax.f32 %v1207, 0.0
        %v1272 = vmax.f32 %v1208, 0.0
        %v1273 = vmax.f32 %v1209, 0.0
        %v1274 = vmax.f32 %v1210, 0.0
        %vm1275 = vcmask 523264
        %v1276 = vsel %vm1275, %v1211, 0.0
        %v1277 = vsel %vm1275, %v1212, 0.0
        %v1278 = vadd.f32 %v1276, %v1277
        %v1279 = vsel %vm1275, %v1213, 0.0
        %v1280 = vadd.f32 %v1278, %v1279
        %v1281 = vsel %vm1275, %v1214, 0.0
        %v1282 = vadd.f32 %v1280, %v1281
        %v1283 = vsel %vm1275, %v1215, 0.0
        %v1284 = vadd.f32 %v1282, %v1283
        %v1285 = vsel %vm1275, %v1216, 0.0
        %v1286 = vadd.f32 %v1284, %v1285
        %v1287 = vsel %vm1275, %v1217, 0.0
        %v1288 = vadd.f32 %v1286, %v1287
        %v1289 = vsel %vm1275, %v1218, 0.0
        %v1290 = vadd.f32 %v1288, %v1289
        %v1291 = vsel %vm1275, %v1219, 0.0
        %v1292 = vadd.f32 %v1290, %v1291
        %v1293 = vsel %vm1275, %v1220, 0.0
        %v1294 = vadd.f32 %v1292, %v1293
        %v1295 = vsel %vm1275, %v1221, 0.0
        %v1296 = vadd.f32 %v1294, %v1295
        %v1297 = vsel %vm1275, %v1222, 0.0
        %v1298 = vadd.f32 %v1296, %v1297
        %v1299 = vsel %vm1275, %v1223, 0.0
        %v1300 = vadd.f32 %v1298, %v1299
        %v1301 = vsel %vm1275, %v1224, 0.0
        %v1302 = vadd.f32 %v1300, %v1301
        %v1303 = vsel %vm1275, %v1225, 0.0
        %v1304 = vadd.f32 %v1302, %v1303
        %v1305 = vsel %vm1275, %v1226, 0.0
        %v1306 = vadd.f32 %v1304, %v1305
        %v1307 = vsel %vm1275, %v1227, 0.0
        %v1308 = vadd.f32 %v1306, %v1307
        %v1309 = vsel %vm1275, %v1228, 0.0
        %v1310 = vadd.f32 %v1308, %v1309
        %v1311 = vsel %vm1275, %v1229, 0.0
        %v1312 = vadd.f32 %v1310, %v1311
        %v1313 = vsel %vm1275, %v1230, 0.0
        %v1314 = vadd.f32 %v1312, %v1313
        %v1315 = vsel %vm1275, %v1231, 0.0
        %v1316 = vadd.f32 %v1314, %v1315
        %v1317 = vsel %vm1275, %v1232, 0.0
        %v1318 = vadd.f32 %v1316, %v1317
        %v1319 = vsel %vm1275, %v1233, 0.0
        %v1320 = vadd.f32 %v1318, %v1319
        %v1321 = vsel %vm1275, %v1234, 0.0
        %v1322 = vadd.f32 %v1320, %v1321
        %v1323 = vsel %vm1275, %v1235, 0.0
        %v1324 = vadd.f32 %v1322, %v1323
        %v1325 = vsel %vm1275, %v1236, 0.0
        %v1326 = vadd.f32 %v1324, %v1325
        %v1327 = vsel %vm1275, %v1237, 0.0
        %v1328 = vadd.f32 %v1326, %v1327
        %v1329 = vsel %vm1275, %v1238, 0.0
        %v1330 = vadd.f32 %v1328, %v1329
        %v1331 = vsel %vm1275, %v1239, 0.0
        %v1332 = vadd.f32 %v1330, %v1331
        %v1333 = vsel %vm1275, %v1240, 0.0
        %v1334 = vadd.f32 %v1332, %v1333
        %v1335 = vsel %vm1275, %v1241, 0.0
        %v1336 = vadd.f32 %v1334, %v1335
        %v1337 = vsel %vm1275, %v1242, 0.0
        %v1338 = vadd.f32 %v1336, %v1337
        %v1339 = vrot.slane %v1338, 4
        %v1340 = vadd.f32 %v1338, %v1339
        %v1341 = vrot.slane %v1340, 2
        %v1342 = vadd.f32 %v1340, %v1341
        %v1343 = vrot.slane %v1342, 1
        %v1344 = vadd.f32 %v1342, %v1343
        %v1345 = vsel %vm1275, %v1243, 0.0
        %v1346 = vsel %vm1275, %v1244, 0.0
        %v1347 = vadd.f32 %v1345, %v1346
        %v1348 = vsel %vm1275, %v1245, 0.0
        %v1349 = vadd.f32 %v1347, %v1348
        %v1350 = vsel %vm1275, %v1246, 0.0
        %v1351 = vadd.f32 %v1349, %v1350
        %v1352 = vsel %vm1275, %v1247, 0.0
        %v1353 = vadd.f32 %v1351, %v1352
        %v1354 = vsel %vm1275, %v1248, 0.0
        %v1355 = vadd.f32 %v1353, %v1354
        %v1356 = vsel %vm1275, %v1249, 0.0
        %v1357 = vadd.f32 %v1355, %v1356
        %v1358 = vsel %vm1275, %v1250, 0.0
        %v1359 = vadd.f32 %v1357, %v1358
        %v1360 = vsel %vm1275, %v1251, 0.0
        %v1361 = vadd.f32 %v1359, %v1360
        %v1362 = vsel %vm1275, %v1252, 0.0
        %v1363 = vadd.f32 %v1361, %v1362
        %v1364 = vsel %vm1275, %v1253, 0.0
        %v1365 = vadd.f32 %v1363, %v1364
        %v1366 = vsel %vm1275, %v1254, 0.0
        %v1367 = vadd.f32 %v1365, %v1366
        %v1368 = vsel %vm1275, %v1255, 0.0
        %v1369 = vadd.f32 %v1367, %v1368
        %v1370 = vsel %vm1275, %v1256, 0.0
        %v1371 = vadd.f32 %v1369, %v1370
        %v1372 = vsel %vm1275, %v1257, 0.0
        %v1373 = vadd.f32 %v1371, %v1372
        %v1374 = vsel %vm1275, %v1258, 0.0
        %v1375 = vadd.f32 %v1373, %v1374
        %v1376 = vsel %vm1275, %v1259, 0.0
        %v1377 = vadd.f32 %v1375, %v1376
        %v1378 = vsel %vm1275, %v1260, 0.0
        %v1379 = vadd.f32 %v1377, %v1378
        %v1380 = vsel %vm1275, %v1261, 0.0
        %v1381 = vadd.f32 %v1379, %v1380
        %v1382 = vsel %vm1275, %v1262, 0.0
        %v1383 = vadd.f32 %v1381, %v1382
        %v1384 = vsel %vm1275, %v1263, 0.0
        %v1385 = vadd.f32 %v1383, %v1384
        %v1386 = vsel %vm1275, %v1264, 0.0
        %v1387 = vadd.f32 %v1385, %v1386
        %v1388 = vsel %vm1275, %v1265, 0.0
        %v1389 = vadd.f32 %v1387, %v1388
        %v1390 = vsel %vm1275, %v1266, 0.0
        %v1391 = vadd.f32 %v1389, %v1390
        %v1392 = vsel %vm1275, %v1267, 0.0
        %v1393 = vadd.f32 %v1391, %v1392
        %v1394 = vsel %vm1275, %v1268, 0.0
        %v1395 = vadd.f32 %v1393, %v1394
        %v1396 = vsel %vm1275, %v1269, 0.0
        %v1397 = vadd.f32 %v1395, %v1396
        %v1398 = vsel %vm1275, %v1270, 0.0
        %v1399 = vadd.f32 %v1397, %v1398
        %v1400 = vsel %vm1275, %v1271, 0.0
        %v1401 = vadd.f32 %v1399, %v1400
        %v1402 = vsel %vm1275, %v1272, 0.0
        %v1403 = vadd.f32 %v1401, %v1402
        %v1404 = vsel %vm1275, %v1273, 0.0
        %v1405 = vadd.f32 %v1403, %v1404
        %v1406 = vsel %vm1275, %v1274, 0.0
        %v1407 = vadd.f32 %v1405, %v1406
        %v1408 = vrot.slane %v1407, 4
        %v1409 = vadd.f32 %v1407, %v1408
        %v1410 = vrot.slane %v1409, 2
        %v1411 = vadd.f32 %v1409, %v1410
        %v1412 = vrot.slane %v1411, 1
        %v1413 = vadd.f32 %v1411, %v1412
        %v1414 = vmul.f32 %v1344, 0.00390625
        %v1415 = vmul.f32 %v1413, 0.00390625
        %v1416 = vpack.c.bf16 %v1414, %v1414
        %v1417 = vpack.c.bf16 %v1415, %v1415
        %v1418 = vld [vmem:[%s426] sm:$0xf]
        %v1419 = vld [vmem:[%s426 + $0x4] sm:$0xf]
        %v1420 = vld [vmem:[%s426 + $0x8] sm:$0xf]
        %v1421 = vld [vmem:[%s426 + $0xc] sm:$0xf]
        %v1422 = vld [vmem:[%s426 + $0x10] sm:$0xf]
        %v1423 = vld [vmem:[%s426 + $0x14] sm:$0xf]
        %v1424 = vld [vmem:[%s426 + $0x18] sm:$0xf]
        %v1425 = vld [vmem:[%s426 + $0x1c] sm:$0xf]
        %v1426 = vld [vmem:[%s429] sm:$0x1]
        %v1428 = vlaneseq
        %v1429 = vshrl.u32 %v1428, 7
        %v1430 = vsub.s32 0, %v1429
        %v1431 = vrot.slane %v1426, %v1430
        %v1435 = vunpack.c.l.b16 %v1416
        %v1436 = vunpack.c.l.b16 %v1417
        %vm1437 = vcmask 1041409
        %v1438 = vsel %vm1437, %v1436, %v1435
        %v1439 = vpack.c.b16 %v1438, %v1438
        %v1448 = vunpack.c.l.b16 %v1418
        %v1449 = vunpack.c.l.b16 %v1419
        %v1450 = vunpack.c.l.b16 %v1420
        %v1451 = vunpack.c.l.b16 %v1421
        %v1452 = vunpack.c.l.b16 %v1422
        %v1453 = vunpack.c.l.b16 %v1423
        %v1454 = vunpack.c.l.b16 %v1424
        %v1455 = vunpack.c.l.b16 %v1425
        %v1456 = vpack.c.b16 %v1449, %v1448
        %v1457 = vpack.c.b16 %v1451, %v1450
        %v1458 = vpack.c.b16 %v1453, %v1452
        %v1459 = vpack.c.b16 %v1455, %v1454
        %v1465 = vsel %vm1275, %v1439, 0
        %1467 = vmatprep.subr.bf16.mxu0 0
        %1468 = vmatpush1.bf16.msra.mxu0 %v1456
        %1469 = vmatprep.subr.bf16.mxu0 0
        %1470 = vmatpush1.bf16.msra.mxu0 %v1457
        %1471 = vmatprep.subr.bf16.mxu0 0
        %1472 = vmatpush1.bf16.msra.mxu0 %v1458
        %1473 = vmatprep.subr.bf16.mxu0 0
        %1474 = vmatpush1.bf16.msra.mxu0 %v1459
        %1475 = vmatprep.subr.bf16.mxu0 0
        %1476 = vmatpush1.bf16.msra.mxu0 0
        %1477 = vmatprep.subr.bf16.mxu0 0
        %1478 = vmatpush1.bf16.msra.mxu0 0
        %1479 = vmatprep.subr.bf16.mxu0 0
        %1480 = vmatpush1.bf16.msra.mxu0 0
        %1481 = vmatprep.subr.bf16.mxu0 0
        %1482 = vmatpush1.bf16.msra.mxu0 0
        %1483 = vmatprep.subr.bf16.mxu0 0
        %1484 = vmatpush1.bf16.msra.mxu0 0
        %1485 = vmatprep.subr.bf16.mxu0 0
        %1486 = vmatpush1.bf16.msra.mxu0 0
        %1487 = vmatprep.subr.bf16.mxu0 0
        %1488 = vmatpush1.bf16.msra.mxu0 0
        %1489 = vmatprep.subr.bf16.mxu0 0
        %1490 = vmatpush1.bf16.msra.mxu0 0
        %1491 = vmatprep.subr.bf16.mxu0 0
        %1492 = vmatpush1.bf16.msra.mxu0 0
        %1493 = vmatprep.subr.bf16.mxu0 0
        %1494 = vmatpush1.bf16.msra.mxu0 0
        %1495 = vmatprep.subr.bf16.mxu0 0
        %1496 = vmatpush1.bf16.msra.mxu0 0
        %1497 = vmatprep.subr.bf16.mxu0 0
        %1498 = vmatpush1.bf16.msra.mxu0 0
        %1499 = vmatprep.mubr.bf16.mxu0 0
        %1500 = vmatmul.mubr.bf16.gmra.mrb[0].mxu0 %v1465
        %v1501 = vpop.f32.mrb[0].mxu0
        %v1502 = vadd.f32 %v1431, %v1501
        %v1503 = vpop.f32.mrb[0].mxu0
        %v1504 = vpop.f32.mrb[0].mxu0
        %v1505 = vpop.f32.mrb[0].mxu0
        %1506 = vdwg.mxu0
        %v1507 = vmax.f32 %v1502, 0.0
        %v1508 = vpack.c.bf16 %v1507, %v1507
        %v1509 = vld [vmem:[%s434] sm:$0xf]
        %v1510 = vld [vmem:[%s434 + $0x4] sm:$0xf]
        %v1511 = vld [vmem:[%s434 + $0x8] sm:$0xf]
        %v1512 = vld [vmem:[%s434 + $0xc] sm:$0xf]
        %v1513 = vld [vmem:[%s434 + $0x10] sm:$0xf]
        %v1514 = vld [vmem:[%s434 + $0x14] sm:$0xf]
        %v1515 = vld [vmem:[%s434 + $0x18] sm:$0xf]
        %v1516 = vld [vmem:[%s434 + $0x1c] sm:$0xf]
        %v1517 = vld [vmem:[%s434 + $0x20] sm:$0xf]
        %v1518 = vld [vmem:[%s434 + $0x24] sm:$0xf]
        %v1519 = vld [vmem:[%s434 + $0x28] sm:$0xf]
        %v1520 = vld [vmem:[%s434 + $0x2c] sm:$0xf]
        %v1521 = vld [vmem:[%s434 + $0x30] sm:$0xf]
        %v1522 = vld [vmem:[%s434 + $0x34] sm:$0xf]
        %v1523 = vld [vmem:[%s434 + $0x38] sm:$0xf]
        %v1524 = vld [vmem:[%s434 + $0x3c] sm:$0xf]
        %v1525 = vld [vmem:[%s437] sm:$0x1]
        %v1527 = vlaneseq
        %v1528 = vshrl.u32 %v1527, 7
        %v1529 = vsub.s32 0, %v1528
        %v1530 = vrot.slane %v1525, %v1529
        %v1548 = vunpack.c.l.b16 %v1509
        %v1549 = vunpack.c.l.b16 %v1510
        %v1550 = vunpack.c.l.b16 %v1511
        %v1551 = vunpack.c.l.b16 %v1512
        %v1552 = vunpack.c.l.b16 %v1513
        %v1553 = vunpack.c.l.b16 %v1514
        %v1554 = vunpack.c.l.b16 %v1515
        %v1555 = vunpack.c.l.b16 %v1516
        %v1556 = vunpack.c.l.b16 %v1517
        %v1557 = vunpack.c.l.b16 %v1518
        %v1558 = vunpack.c.l.b16 %v1519
        %v1559 = vunpack.c.l.b16 %v1520
        %v1560 = vunpack.c.l.b16 %v1521
        %v1561 = vunpack.c.l.b16 %v1522
        %v1562 = vunpack.c.l.b16 %v1523
        %v1563 = vunpack.c.l.b16 %v1524
        %v1564 = vpack.c.b16 %v1549, %v1548
        %v1565 = vpack.c.b16 %v1551, %v1550
        %v1566 = vpack.c.b16 %v1553, %v1552
        %v1567 = vpack.c.b16 %v1555, %v1554
        %v1568 = vpack.c.b16 %v1557, %v1556
        %v1569 = vpack.c.b16 %v1559, %v1558
        %v1570 = vpack.c.b16 %v1561, %v1560
        %v1571 = vpack.c.b16 %v1563, %v1562
        %1580 = vmatprep.subr.bf16.mxu0 0
        %1581 = vmatpush1.bf16.msra.mxu0 %v1564
        %1582 = vmatprep.subr.bf16.mxu0 0
        %1583 = vmatpush1.bf16.msra.mxu0 %v1565
        %1584 = vmatprep.subr.bf16.mxu0 0
        %1585 = vmatpush1.bf16.msra.mxu0 %v1566
        %1586 = vmatprep.subr.bf16.mxu0 0
        %1587 = vmatpush1.bf16.msra.mxu0 %v1567
        %1588 = vmatprep.subr.bf16.mxu0 0
        %1589 = vmatpush1.bf16.msra.mxu0 %v1568
        %1590 = vmatprep.subr.bf16.mxu0 0
        %1591 = vmatpush1.bf16.msra.mxu0 %v1569
        %1592 = vmatprep.subr.bf16.mxu0 0
        %1593 = vmatpush1.bf16.msra.mxu0 %v1570
        %1594 = vmatprep.subr.bf16.mxu0 0
        %1595 = vmatpush1.bf16.msra.mxu0 %v1571
        %1596 = vmatprep.subr.bf16.mxu0 0
        %1597 = vmatpush1.bf16.msra.mxu0 0
        %1598 = vmatprep.subr.bf16.mxu0 0
        %1599 = vmatpush1.bf16.msra.mxu0 0
        %1600 = vmatprep.subr.bf16.mxu0 0
        %1601 = vmatpush1.bf16.msra.mxu0 0
        %1602 = vmatprep.subr.bf16.mxu0 0
        %1603 = vmatpush1.bf16.msra.mxu0 0
        %1604 = vmatprep.subr.bf16.mxu0 0
        %1605 = vmatpush1.bf16.msra.mxu0 0
        %1606 = vmatprep.subr.bf16.mxu0 0
        %1607 = vmatpush1.bf16.msra.mxu0 0
        %1608 = vmatprep.subr.bf16.mxu0 0
        %1609 = vmatpush1.bf16.msra.mxu0 0
        %1610 = vmatprep.subr.bf16.mxu0 0
        %1611 = vmatpush1.bf16.msra.mxu0 0
        %1612 = vmatprep.mubr.bf16.mxu0 0
        %1613 = vmatmul.mubr.bf16.gmra.mrb[0].mxu0 %v1508
        %v1614 = vpop.f32.mrb[0].mxu0
        %v1615 = vadd.f32 %v1530, %v1614
        %v1616 = vpop.f32.mrb[0].mxu0
        %v1617 = vpop.f32.mrb[0].mxu0
        %v1618 = vpop.f32.mrb[0].mxu0
        %1619 = vdwg.mxu0
        %v1620 = vlaneseq
        %v1621 = vand.u32 %v1620, 127
        %v1622 = vmax.f32 %v1615, 0.0
        %v1623 = vand.u32 2147483647, %v1615
        %v1624 = vsub.f32 0.0, %v1623
        %v1625 = vmul.f32 %v1624, 1.442695
        %v1626 = vpow.pop %v1625
        %v1627 = vadd.f32 %v1626, 1.0
        %v1628 = vlog2.pop %v1627
        %v1629 = vmul.f32 %v1628, 0.6931472
        %v1630 = vadd.f32 %v1622, %v1629
        %vm1631 = vcmp.ge.s32.totalorder %v1621, 8
        %v1632 = vsel %vm1631, %v1630, %v1615
        %vm1633 = vcmask 123904
        %1634 = vst.msk [vmem:[%s399] sm:$0x3] %vm1633, %v1632
        %1635 = vst [vmem:[%s406] sm:$0x3] %v1507
        %s1636 = sand.u32 %s230, 1
        %s1637 = scalar_lea.sflag [#allocation3], %s1636
        %s1638 = sand.u32 %s230, 1
        %s1639 = smul.addr %s1638, 2
        %s1640 = scalar_lea.vmem [#allocation2], %s1639
        %s1641 = sand.u32 %s258, 1
        %s1642 = scalar_lea.sflag [#allocation5], %s1641
        %s1643 = sand.u32 %s258, 1
        %s1644 = smul.addr %s1643, 2
        %s1645 = scalar_lea.vmem [#allocation4], %s1644
        // Predicated region
        $region49: #{mddn_forward_all.1} parent=47 // pred_check
          %p1646 = pneg %p240
        $region50: #{mddn_forward_all.1} parent=47 // pred_check_branch
          %1648 = sbr.rel (%p1646) target = $region52
        $region51: #{mddn_forward_all.1} parent=47 // pred_region
          %s1650 = ssub.s32 32, 32
          %1651 = vsyncadd %s1637, %s1650
          %s1652 = sadd.s32 %s30, %s31
          %s1653 = smul.addr %s1652, 32
          %s1654 = scalar_lea.hbm %s7, %s1653
          %s1656 = sshll.u32 %s1640, 4
          %s1657 = int_to_ptr.vmem [resolvable:$true] %s1656
          %1659 = dma.vmem_to_hbm [thread:$0]  %s1657, 32, %s1654, %s1637
        $region52: #{mddn_forward_all.1} parent=47 // pred_fallthru
          _
        // Predicated region
        $region53: #{mddn_forward_all.1} parent=47 // pred_check
          %p1660 = pneg %p268
        $region54: #{mddn_forward_all.1} parent=47 // pred_check_branch
          %1662 = sbr.rel (%p1660) target = $region56
        $region55: #{mddn_forward_all.1} parent=47 // pred_region
          %s1664 = ssub.s32 32, 32
          %1665 = vsyncadd %s1642, %s1664
          %s1666 = sadd.s32 %s30, %s31
          %s1667 = smul.addr %s1666, 32
          %s1668 = scalar_lea.hbm %s8, %s1667
          %s1670 = sshll.u32 %s1645, 4
          %s1671 = int_to_ptr.vmem [resolvable:$true] %s1670
          %1673 = dma.vmem_to_hbm [thread:$0]  %s1671, 32, %s1668, %s1642
        $region56: #{mddn_forward_all.1} parent=47 // pred_fallthru
          _
      $region48: #{mddn_forward_all.1} parent=5 // pred_fallthru
        _
      %p1674 = scmp.le.s32.totalorder 2, %s21
      // Predicated region
      $region57: #{mddn_forward_all.1} parent=5 // pred_check
        %p1675 = pneg %p1674
      $region58: #{mddn_forward_all.1} parent=5 // pred_check_branch
        %1677 = sbr.rel (%p1675) target = $region60
      $region59: #{mddn_forward_all.1} parent=5 // pred_region
        %s1678 = ssub.s32 %s21, 2
        // Predicated region
        $region61: #{mddn_forward_all.1} parent=59 // pred_check
          %p1679 = pneg %p246
        $region62: #{mddn_forward_all.1} parent=59 // pred_check_branch
          %1681 = sbr.rel (%p1679) target = $region64
        $region63: #{mddn_forward_all.1} parent=59 // pred_region
          %s1682 = sand.u32 %s231, 1
          %s1683 = scalar_lea.sflag [#allocation3], %s1682
          %s1684 = sand.u32 %s231, 1
          %s1685 = smul.addr %s1684, 2
          %s1686 = scalar_lea.vmem [#allocation2], %s1685
          %1687 = dma.done %s1683, 32
        $region64: #{mddn_forward_all.1} parent=59 // pred_fallthru
          _
        // Predicated region
        $region65: #{mddn_forward_all.1} parent=59 // pred_check
          %p1688 = pneg %p274
        $region66: #{mddn_forward_all.1} parent=59 // pred_check_branch
          %1690 = sbr.rel (%p1688) target = $region68
        $region67: #{mddn_forward_all.1} parent=59 // pred_region
          %s1691 = sand.u32 %s259, 1
          %s1692 = scalar_lea.sflag [#allocation5], %s1691
          %s1693 = sand.u32 %s259, 1
          %s1694 = smul.addr %s1693, 2
          %s1695 = scalar_lea.vmem [#allocation4], %s1694
          %1696 = dma.done %s1692, 32
        $region68: #{mddn_forward_all.1} parent=59 // pred_fallthru
          _
      $region60: #{mddn_forward_all.1} parent=5 // pred_fallthru
        _
    $region6: #{mddn_forward_all.1} parent=1 // loop_footer
      %s25 = sadd.s32 1, %s21
    $region7: #{mddn_forward_all.1} parent=1 // loop_footer_branch
      %20 = sbr.rel target = $region3
    $region8: #{mddn_forward_all.1} parent=1 // loop_exit
      _
    %1697 = vsyncpa [#allocation3], 1
    %s1698 = scalar_lea.sflag [#allocation3], 1
    %1699 = vsyncpa %s1698, 1
    %1700 = vsyncpa [#allocation5], 1
    %s1701 = scalar_lea.sflag [#allocation5], 1
    %1702 = vsyncpa %s1701, 1

</llo_original>
